<compile_context>
chip_gen: v7x
topology: tpu7x:2x2x1
jax: 0.10.0
libtpu: 0.0.40
codegen_flags: <defaults>
</compile_context>

<pallas_src>
import functools

import jax
import jax.numpy as jnp
from jax.experimental import pallas as pl
from jax.experimental.pallas import tpu as pltpu

IN_FEATURES = 4
HIDDEN_SIZE = 200          # logical width (matches the PyTorch module)
HIDDEN_PAD = 256           # MXU-aligned width used inside the kernel
OUT_FEATURES = 2           # logical outputs (Q-values)
OUT_PAD = 128              # lane-dense padded output width


def _round_up(n, m):
    return ((n + m - 1) // m) * m


def _pad2d(a, rows, cols):
    r, c = a.shape
    return jnp.pad(a, ((0, rows - r), (0, cols - c)))


def dqn_kernel(x_ref,
               w1_ref, b1_ref,
               w2_ref, b2_ref,
               w3_ref, b3_ref,
               w4_ref, b4_ref,
               w5_ref, b5_ref,
               out_ref):
    """Fused 5-layer MLP on one (TB, 4) batch tile. bf16 operands, f32 accum."""
    h = x_ref[...]                                                     # (TB, 4) bf16
    for w_ref, b_ref in ((w1_ref, b1_ref), (w2_ref, b2_ref),
                         (w3_ref, b3_ref), (w4_ref, b4_ref)):
        acc = jnp.dot(h, w_ref[...], preferred_element_type=jnp.float32)
        acc = acc + b_ref[...].astype(jnp.float32)
        # max-with-0 commutes with round-to-bf16, so casting first is exact;
        # packed bf16 ReLU halves VALU work on v6e/v7x (neutral on v5e).
        h = jnp.maximum(acc.astype(jnp.bfloat16), 0)                   # (TB, 256) bf16
    out = jnp.dot(h, w5_ref[...], preferred_element_type=jnp.float32)
    out = out + b5_ref[...].astype(jnp.float32)
    out_ref[...] = out.astype(out_ref.dtype)                           # (TB, 128) bf16, lane-dense


def init_params(key):
    """PyTorch nn.Linear-style init (uniform +/- 1/sqrt(fan_in)); stored f32."""
    dims = [IN_FEATURES, HIDDEN_SIZE, HIDDEN_SIZE, HIDDEN_SIZE, HIDDEN_SIZE,
            OUT_FEATURES]
    params = []
    for i in range(len(dims) - 1):
        fan_in, fan_out = dims[i], dims[i + 1]
        key, kw, kb = jax.random.split(key, 3)
        bound = 1.0 / (fan_in ** 0.5)
        w = jax.random.uniform(kw, (fan_in, fan_out), jnp.float32, -bound, bound)
        b = jax.random.uniform(kb, (1, fan_out), jnp.float32, -bound, bound)
        params.append((w, b))
    return params


def prepare_params(params):
    """ONE-TIME: cast weights/biases to bf16 and zero-pad to MXU-friendly shapes.

    Call this once after init / after each optimizer step, NOT per forward call.
    Zero padding keeps hidden lanes 200..255 and output lanes 2..127 exactly 0,
    so the math matches the logical 200/2-wide network.
    """
    (w1, b1), (w2, b2), (w3, b3), (w4, b4), (w5, b5) = params
    bf16 = jnp.bfloat16
    return (
        _pad2d(w1.astype(bf16), IN_FEATURES, HIDDEN_PAD),
        _pad2d(b1.astype(bf16), 1, HIDDEN_PAD),
        _pad2d(w2.astype(bf16), HIDDEN_PAD, HIDDEN_PAD),
        _pad2d(b2.astype(bf16), 1, HIDDEN_PAD),
        _pad2d(w3.astype(bf16), HIDDEN_PAD, HIDDEN_PAD),
        _pad2d(b3.astype(bf16), 1, HIDDEN_PAD),
        _pad2d(w4.astype(bf16), HIDDEN_PAD, HIDDEN_PAD),
        _pad2d(b4.astype(bf16), 1, HIDDEN_PAD),
        _pad2d(w5.astype(bf16), HIDDEN_PAD, OUT_PAD),
        _pad2d(b5.astype(bf16), 1, OUT_PAD),
    )


@functools.partial(jax.jit, static_argnames=("block_b",))
def dqn_forward(x, padded_params, block_b=128):
    """x: (B, 4) float; padded_params: output of prepare_params().

    Returns (B, 2) bf16 Q-values (same semantics as DQN.forward(Q_val=True),
    to bf16-operand precision).
    """
    B = x.shape[0]

    # TB: multiple of 16 (bf16 sublane tile), sized for >=4 grid steps so the
    # v7x megacore "parallel" axis gives both TensorCores >=2 steps; capped at
    # block_b (default 128) to keep the f32 accumulator / intermediate small.
    TB = min(block_b, max(16, _round_up(pl.cdiv(B, 4), 16)))
    Bp = _round_up(B, TB)

    xp = x.astype(jnp.bfloat16)
    if Bp != B:
        xp = jnp.pad(xp, ((0, Bp - B), (0, 0)))

    x_spec = pl.BlockSpec((TB, IN_FEATURES), lambda i: (i, 0))
    const_block = lambda i: (0, 0)           # weights/biases: VMEM-resident across the grid
    in_specs = [x_spec] + [pl.BlockSpec(p.shape, const_block)
                           for p in padded_params]
    out_spec = pl.BlockSpec((TB, OUT_PAD), lambda i: (i, 0))

    out_padded = pl.pallas_call(
        dqn_kernel,
        out_shape=jax.ShapeDtypeStruct((Bp, OUT_PAD), jnp.bfloat16),
        grid=(Bp // TB,),
        in_specs=in_specs,
        out_specs=out_spec,
        compiler_params=pltpu.CompilerParams(
            dimension_semantics=("parallel",)),   # v7x: shard grid over 2 TCs
    )(xp, *padded_params)

    return out_padded[:B, :OUT_FEATURES]


def reference_forward(x, params):
    """Pure-JAX reference mirroring the kernel's bf16-operand / f32-accum math."""
    h = x.astype(jnp.bfloat16)
    for i, (w, b) in enumerate(params):
        acc = jnp.dot(h, w.astype(jnp.bfloat16),
                      preferred_element_type=jnp.float32)
        acc = acc + b.astype(jnp.float32)
        if i < len(params) - 1:
            h = jnp.maximum(acc.astype(jnp.bfloat16), 0)
        else:
            h = acc.astype(jnp.bfloat16)
    return h.astype(jnp.float32)


if __name__ == "__main__":
    key = jax.random.PRNGKey(0)
    key, kx = jax.random.split(key)
    params = init_params(key)
    padded = prepare_params(params)       # one-time prep, outside the call path

    # Replay-batch path: B=128 -> TB=32, 4 grid steps, weights VMEM-resident.
    batch = 128
    x = jax.random.normal(kx, (batch, IN_FEATURES), jnp.float32)
    out = jax.block_until_ready(dqn_forward(x, padded))
    ref = reference_forward(x, params)
    assert out.shape == (batch, OUT_FEATURES)
    assert jnp.allclose(out.astype(jnp.float32), ref, atol=2e-2, rtol=2e-2)

    # Tiny act()-style call (non-multiple-of-16 batch exercises the padding
    # path).  Action selection done host-side with jnp.argmax, matching
    # DQN.forward(Q_val=False).
    # TODO(synk): optional in-kernel argmax output (compare lanes 0 vs 1) would
    # avoid reading back the padded Q slab for the pure action-selection path.
    x_small = jax.random.normal(jax.random.PRNGKey(1), (5, IN_FEATURES),
                                jnp.float32)
    out_small = jax.block_until_ready(dqn_forward(x_small, padded))
    ref_small = reference_forward(x_small, params)
    assert out_small.shape == (5, OUT_FEATURES)
    assert jnp.allclose(out_small.astype(jnp.float32), ref_small,
                        atol=2e-2, rtol=2e-2)
    actions = jnp.argmax(out_small, axis=-1)
    assert actions.shape == (5,)

    print("KERNEL_OK")
</pallas_src>

<mosaic_0001>
module attributes {stable_mosaic.version = 11 : i64} {
  func.func @dqn_kernel(%arg0: i32, %arg1: memref<32x4xbf16, #tpu.memory_space<vmem>>, %arg2: memref<4x256xbf16, #tpu.memory_space<vmem>>, %arg3: memref<1x256xbf16, #tpu.memory_space<vmem>>, %arg4: memref<256x256xbf16, #tpu.memory_space<vmem>>, %arg5: memref<1x256xbf16, #tpu.memory_space<vmem>>, %arg6: memref<256x256xbf16, #tpu.memory_space<vmem>>, %arg7: memref<1x256xbf16, #tpu.memory_space<vmem>>, %arg8: memref<256x256xbf16, #tpu.memory_space<vmem>>, %arg9: memref<1x256xbf16, #tpu.memory_space<vmem>>, %arg10: memref<256x128xbf16, #tpu.memory_space<vmem>>, %arg11: memref<1x128xbf16, #tpu.memory_space<vmem>>, %arg12: memref<32x128xbf16, #tpu.memory_space<vmem>>) attributes {dimension_semantics = [#tpu.dimension_semantics<parallel>], iteration_bounds = array<i64: 4>, scalar_prefetch = 0 : i64, scratch_operands = 0 : i64, tpu.core_type = #tpu.core_type<tc>, window_params = [{transform_indices = @transform_0, window_bounds = array<i64: 32, 4>}, {pipeline_mode = #tpu.pipeline_mode<synchronous>, transform_indices = @transform_1, window_bounds = array<i64: 4, 256>}, {pipeline_mode = #tpu.pipeline_mode<synchronous>, transform_indices = @transform_2, window_bounds = array<i64: 1, 256>}, {pipeline_mode = #tpu.pipeline_mode<synchronous>, transform_indices = @transform_3, window_bounds = array<i64: 256, 256>}, {pipeline_mode = #tpu.pipeline_mode<synchronous>, transform_indices = @transform_4, window_bounds = array<i64: 1, 256>}, {pipeline_mode = #tpu.pipeline_mode<synchronous>, transform_indices = @transform_5, window_bounds = array<i64: 256, 256>}, {pipeline_mode = #tpu.pipeline_mode<synchronous>, transform_indices = @transform_6, window_bounds = array<i64: 1, 256>}, {pipeline_mode = #tpu.pipeline_mode<synchronous>, transform_indices = @transform_7, window_bounds = array<i64: 256, 256>}, {pipeline_mode = #tpu.pipeline_mode<synchronous>, transform_indices = @transform_8, window_bounds = array<i64: 1, 256>}, {pipeline_mode = #tpu.pipeline_mode<synchronous>, transform_indices = @transform_9, window_bounds = array<i64: 256, 128>}, {pipeline_mode = #tpu.pipeline_mode<synchronous>, transform_indices = @transform_10, window_bounds = array<i64: 1, 128>}, {transform_indices = @transform_11, window_bounds = array<i64: 32, 128>}]} {
    %c0 = arith.constant 0 : index
    %c0_0 = arith.constant 0 : index
    %0 = vector.load %arg1[%c0, %c0_0] : memref<32x4xbf16, #tpu.memory_space<vmem>>, vector<32x4xbf16>
    %c0_1 = arith.constant 0 : index
    %c0_2 = arith.constant 0 : index
    %1 = vector.load %arg2[%c0_1, %c0_2] : memref<4x256xbf16, #tpu.memory_space<vmem>>, vector<4x256xbf16>
    %cst = arith.constant dense<0.000000e+00> : vector<32x256xf32>
    %2 = tpu.matmul %0, %1, %cst {dimension_numbers = #tpu.dot_dimension_numbers<[1], [0], [0], [1], [0, 0, 1, 1], [], []>} : vector<32x4xbf16>, vector<4x256xbf16>, vector<32x256xf32> -> vector<32x256xf32>
    %c0_3 = arith.constant 0 : index
    %c0_4 = arith.constant 0 : index
    %3 = vector.load %arg3[%c0_3, %c0_4] : memref<1x256xbf16, #tpu.memory_space<vmem>>, vector<1x256xbf16>
    %4 = arith.extf %3 : vector<1x256xbf16> to vector<1x256xf32>
    %5 = vector.broadcast %4 : vector<1x256xf32> to vector<32x256xf32>
    %6 = arith.addf %2, %5 : vector<32x256xf32>
    %7 = arith.truncf %6 : vector<32x256xf32> to vector<32x256xbf16>
    %cst_5 = arith.constant 0.000000e+00 : bf16
    %8 = vector.broadcast %cst_5 : bf16 to vector<32x256xbf16>
    %9 = arith.maximumf %7, %8 : vector<32x256xbf16>
    %c0_6 = arith.constant 0 : index
    %c0_7 = arith.constant 0 : index
    %10 = vector.load %arg4[%c0_6, %c0_7] : memref<256x256xbf16, #tpu.memory_space<vmem>>, vector<256x256xbf16>
    %cst_8 = arith.constant dense<0.000000e+00> : vector<32x256xf32>
    %11 = tpu.matmul %9, %10, %cst_8 {dimension_numbers = #tpu.dot_dimension_numbers<[1], [0], [0], [1], [0, 0, 1, 1], [], []>} : vector<32x256xbf16>, vector<256x256xbf16>, vector<32x256xf32> -> vector<32x256xf32>
    %c0_9 = arith.constant 0 : index
    %c0_10 = arith.constant 0 : index
    %12 = vector.load %arg5[%c0_9, %c0_10] : memref<1x256xbf16, #tpu.memory_space<vmem>>, vector<1x256xbf16>
    %13 = arith.extf %12 : vector<1x256xbf16> to vector<1x256xf32>
    %14 = vector.broadcast %13 : vector<1x256xf32> to vector<32x256xf32>
    %15 = arith.addf %11, %14 : vector<32x256xf32>
    %16 = arith.truncf %15 : vector<32x256xf32> to vector<32x256xbf16>
    %cst_11 = arith.constant 0.000000e+00 : bf16
    %17 = vector.broadcast %cst_11 : bf16 to vector<32x256xbf16>
    %18 = arith.maximumf %16, %17 : vector<32x256xbf16>
    %c0_12 = arith.constant 0 : index
    %c0_13 = arith.constant 0 : index
    %19 = vector.load %arg6[%c0_12, %c0_13] : memref<256x256xbf16, #tpu.memory_space<vmem>>, vector<256x256xbf16>
    %cst_14 = arith.constant dense<0.000000e+00> : vector<32x256xf32>
    %20 = tpu.matmul %18, %19, %cst_14 {dimension_numbers = #tpu.dot_dimension_numbers<[1], [0], [0], [1], [0, 0, 1, 1], [], []>} : vector<32x256xbf16>, vector<256x256xbf16>, vector<32x256xf32> -> vector<32x256xf32>
    %c0_15 = arith.constant 0 : index
    %c0_16 = arith.constant 0 : index
    %21 = vector.load %arg7[%c0_15, %c0_16] : memref<1x256xbf16, #tpu.memory_space<vmem>>, vector<1x256xbf16>
    %22 = arith.extf %21 : vector<1x256xbf16> to vector<1x256xf32>
    %23 = vector.broadcast %22 : vector<1x256xf32> to vector<32x256xf32>
    %24 = arith.addf %20, %23 : vector<32x256xf32>
    %25 = arith.truncf %24 : vector<32x256xf32> to vector<32x256xbf16>
    %cst_17 = arith.constant 0.000000e+00 : bf16
    %26 = vector.broadcast %cst_17 : bf16 to vector<32x256xbf16>
    %27 = arith.maximumf %25, %26 : vector<32x256xbf16>
    %c0_18 = arith.constant 0 : index
    %c0_19 = arith.constant 0 : index
    %28 = vector.load %arg8[%c0_18, %c0_19] : memref<256x256xbf16, #tpu.memory_space<vmem>>, vector<256x256xbf16>
    %cst_20 = arith.constant dense<0.000000e+00> : vector<32x256xf32>
    %29 = tpu.matmul %27, %28, %cst_20 {dimension_numbers = #tpu.dot_dimension_numbers<[1], [0], [0], [1], [0, 0, 1, 1], [], []>} : vector<32x256xbf16>, vector<256x256xbf16>, vector<32x256xf32> -> vector<32x256xf32>
    %c0_21 = arith.constant 0 : index
    %c0_22 = arith.constant 0 : index
    %30 = vector.load %arg9[%c0_21, %c0_22] : memref<1x256xbf16, #tpu.memory_space<vmem>>, vector<1x256xbf16>
    %31 = arith.extf %30 : vector<1x256xbf16> to vector<1x256xf32>
    %32 = vector.broadcast %31 : vector<1x256xf32> to vector<32x256xf32>
    %33 = arith.addf %29, %32 : vector<32x256xf32>
    %34 = arith.truncf %33 : vector<32x256xf32> to vector<32x256xbf16>
    %cst_23 = arith.constant 0.000000e+00 : bf16
    %35 = vector.broadcast %cst_23 : bf16 to vector<32x256xbf16>
    %36 = arith.maximumf %34, %35 : vector<32x256xbf16>
    %c0_24 = arith.constant 0 : index
    %c0_25 = arith.constant 0 : index
    %37 = vector.load %arg10[%c0_24, %c0_25] : memref<256x128xbf16, #tpu.memory_space<vmem>>, vector<256x128xbf16>
    %cst_26 = arith.constant dense<0.000000e+00> : vector<32x128xf32>
    %38 = tpu.matmul %36, %37, %cst_26 {dimension_numbers = #tpu.dot_dimension_numbers<[1], [0], [0], [1], [0, 0, 1, 1], [], []>} : vector<32x256xbf16>, vector<256x128xbf16>, vector<32x128xf32> -> vector<32x128xf32>
    %c0_27 = arith.constant 0 : index
    %c0_28 = arith.constant 0 : index
    %39 = vector.load %arg11[%c0_27, %c0_28] : memref<1x128xbf16, #tpu.memory_space<vmem>>, vector<1x128xbf16>
    %40 = arith.extf %39 : vector<1x128xbf16> to vector<1x128xf32>
    %41 = vector.broadcast %40 : vector<1x128xf32> to vector<32x128xf32>
    %42 = arith.addf %38, %41 : vector<32x128xf32>
    %43 = arith.truncf %42 : vector<32x128xf32> to vector<32x128xbf16>
    %c0_29 = arith.constant 0 : index
    %c0_30 = arith.constant 0 : index
    %44 = vector.load %arg12[%c0_29, %c0_30] : memref<32x128xbf16, #tpu.memory_space<vmem>>, vector<32x128xbf16>
    tpu.vector_store %arg12[%c0_29, %c0_30], %43 {strides = array<i32>} : memref<32x128xbf16, #tpu.memory_space<vmem>>, vector<32x128xbf16>,
    return
  }
  func.func @transform_0(%arg0: i32) -> (i32, i32) {
    %c0_i32 = arith.constant 0 : i32
    %c0_i32_0 = arith.constant 0 : i32
    return %arg0, %c0_i32 : i32, i32
  }
  func.func @transform_1(%arg0: i32) -> (i32, i32) {
    %c0_i32 = arith.constant 0 : i32
    %c0_i32_0 = arith.constant 0 : i32
    %c0_i32_1 = arith.constant 0 : i32
    return %c0_i32, %c0_i32_0 : i32, i32
  }
  func.func @transform_2(%arg0: i32) -> (i32, i32) {
    %c0_i32 = arith.constant 0 : i32
    %c0_i32_0 = arith.constant 0 : i32
    %c0_i32_1 = arith.constant 0 : i32
    return %c0_i32, %c0_i32_0 : i32, i32
  }
  func.func @transform_3(%arg0: i32) -> (i32, i32) {
    %c0_i32 = arith.constant 0 : i32
    %c0_i32_0 = arith.constant 0 : i32
    %c0_i32_1 = arith.constant 0 : i32
    return %c0_i32, %c0_i32_0 : i32, i32
  }
  func.func @transform_4(%arg0: i32) -> (i32, i32) {
    %c0_i32 = arith.constant 0 : i32
    %c0_i32_0 = arith.constant 0 : i32
    %c0_i32_1 = arith.constant 0 : i32
    return %c0_i32, %c0_i32_0 : i32, i32
  }
  func.func @transform_5(%arg0: i32) -> (i32, i32) {
    %c0_i32 = arith.constant 0 : i32
    %c0_i32_0 = arith.constant 0 : i32
    %c0_i32_1 = arith.constant 0 : i32
    return %c0_i32, %c0_i32_0 : i32, i32
  }
  func.func @transform_6(%arg0: i32) -> (i32, i32) {
    %c0_i32 = arith.constant 0 : i32
    %c0_i32_0 = arith.constant 0 : i32
    %c0_i32_1 = arith.constant 0 : i32
    return %c0_i32, %c0_i32_0 : i32, i32
  }
  func.func @transform_7(%arg0: i32) -> (i32, i32) {
    %c0_i32 = arith.constant 0 : i32
    %c0_i32_0 = arith.constant 0 : i32
    %c0_i32_1 = arith.constant 0 : i32
    return %c0_i32, %c0_i32_0 : i32, i32
  }
  func.func @transform_8(%arg0: i32) -> (i32, i32) {
    %c0_i32 = arith.constant 0 : i32
    %c0_i32_0 = arith.constant 0 : i32
    %c0_i32_1 = arith.constant 0 : i32
    return %c0_i32, %c0_i32_0 : i32, i32
  }
  func.func @transform_9(%arg0: i32) -> (i32, i32) {
    %c0_i32 = arith.constant 0 : i32
    %c0_i32_0 = arith.constant 0 : i32
    %c0_i32_1 = arith.constant 0 : i32
    return %c0_i32, %c0_i32_0 : i32, i32
  }
  func.func @transform_10(%arg0: i32) -> (i32, i32) {
    %c0_i32 = arith.constant 0 : i32
    %c0_i32_0 = arith.constant 0 : i32
    %c0_i32_1 = arith.constant 0 : i32
    return %c0_i32, %c0_i32_0 : i32, i32
  }
  func.func @transform_11(%arg0: i32) -> (i32, i32) {
    %c0_i32 = arith.constant 0 : i32
    %c0_i32_0 = arith.constant 0 : i32
    return %arg0, %c0_i32 : i32, i32
  }
}

</mosaic_0001>

<llo_original>
// kernel: dqn_forward.1
$region0: #{dqn_forward.1}
  #allocation0 [shape = 'u32[]', space=smem, size = 0x4, offset = 0x4, fixed_abs, tag = 'smem constant byte address 0x4 - core index']
  #allocation1 [shape = 'u32[144,128]{1,0:T(1,128)}', space=vmem, size = 0x12000, scoped, tag = 'internal scratch']
  %s0 = inlined_call_operand.vmem [shape: bf16[128,4], index: 0, kind: input, shape index: {}]
  %s1 = inlined_call_operand.vmem [shape: bf16[4,256], index: 1, kind: input, shape index: {}]
  %s2 = inlined_call_operand.vmem [shape: bf16[1,256], index: 2, kind: input, shape index: {}]
  %s3 = inlined_call_operand.hbm [shape: bf16[256,256], index: 3, kind: input, shape index: {}]
  %s4 = inlined_call_operand.vmem [shape: bf16[1,256], index: 4, kind: input, shape index: {}]
  %s5 = inlined_call_operand.hbm [shape: bf16[256,256], index: 5, kind: input, shape index: {}]
  %s6 = inlined_call_operand.vmem [shape: bf16[1,256], index: 6, kind: input, shape index: {}]
  %s7 = inlined_call_operand.hbm [shape: bf16[256,256], index: 7, kind: input, shape index: {}]
  %s8 = inlined_call_operand.vmem [shape: bf16[1,256], index: 8, kind: input, shape index: {}]
  %s9 = inlined_call_operand.hbm [shape: bf16[256,128], index: 9, kind: input, shape index: {}]
  %s10 = inlined_call_operand.vmem [shape: bf16[1,128], index: 10, kind: input, shape index: {}]
  %s11 = inlined_call_operand.vmem [shape: bf16[128,128], index: 11, kind: output, shape index: {}]
  %s12 = sld [smem:[#allocation0]]
  $region93: #{dqn_forward.1} parent=0
    _
  %s14 = ssub.s32 1, %s12
  %s15 = scalar_select 0, %s14, %s12
  $region1: #{dqn_forward.1} parent=0
    #allocation2 [shape = 'u8[131072]{0}', space=vmem, size = 0x20000, scoped, tag = 'input window, operand 3, single buffered']
    #allocation3 [shape = 's32[2]{0}', space=sflag, size = 0x8, scoped, tag = 'scoped memory for dqn_forward.1']
    #allocation4 [shape = 'u8[131072]{0}', space=vmem, size = 0x20000, scoped, tag = 'input window, operand 5, single buffered']
    #allocation5 [shape = 's32[1]{0}', space=sflag, size = 0x4, scoped, tag = 'scoped memory for dqn_forward.1']
    #allocation6 [shape = 'u8[131072]{0}', space=vmem, size = 0x20000, scoped, tag = 'input window, operand 7, single buffered']
    #allocation7 [shape = 'u8[65536]{0}', space=vmem, size = 0x10000, scoped, tag = 'input window, operand 9, single buffered']
    #allocation8 [shape = 's32[1]{0}', space=sflag, size = 0x4, scoped, tag = 'scoped memory for dqn_forward.1']
    %16 = vsyncpa [#allocation3], 0
    %17 = vsyncpa [#allocation5], 0
    %18 = vsyncpa [#allocation8], 0
    loop: start=0, step=1, limit=6
    $region2: #{dqn_forward.1} parent=1 // loop_pre_header
      _
    $region3: #{dqn_forward.1} parent=1 // loop_header
      %s20 = sphi 0, %s24
      %p21 = scmp.ge.s32.totalorder %s20, 6
      %s30 = sphi 0, %s32
      %s33 = sphi 0, %s30
      %s34 = sphi 0, %s33
      %s50 = sphi 0, %s34
      %s54 = sphi 0, %s54
      %s56 = sphi 0, %s54
      %s57 = sphi 0, %s56
      %s71 = sphi 0, %s57
      %s75 = sphi 0, %s75
      %s77 = sphi 0, %s75
      %s78 = sphi 0, %s77
      %s92 = sphi 0, %s78
      %s96 = sphi 0, %s96
      %s98 = sphi 0, %s96
      %s99 = sphi 0, %s98
      %s113 = sphi 0, %s99
      %s117 = sphi 0, %s117
      %s119 = sphi 0, %s117
      %s120 = sphi 0, %s119
      %s134 = sphi 0, %s120
      %s138 = sphi 0, %s138
      %s140 = sphi 0, %s138
      %s141 = sphi 0, %s140
      %s155 = sphi 0, %s141
      %s159 = sphi 0, %s159
      %s161 = sphi 0, %s159
      %s162 = sphi 0, %s161
      %s176 = sphi 0, %s162
      %s180 = sphi 0, %s180
      %s182 = sphi 0, %s180
      %s183 = sphi 0, %s182
      %s197 = sphi 0, %s183
      %s201 = sphi 0, %s201
      %s203 = sphi 0, %s201
      %s204 = sphi 0, %s203
      %s218 = sphi 0, %s204
      %s222 = sphi 0, %s222
      %s224 = sphi 0, %s222
      %s225 = sphi 0, %s224
      %s239 = sphi 0, %s225
      %s243 = sphi 0, %s243
      %s245 = sphi 0, %s243
      %s246 = sphi 0, %s245
      %s260 = sphi 0, %s246
      %s266 = sphi 0, %s268
      %s269 = sphi 0, %s266
      %s270 = sphi 0, %s269
      %s286 = sphi 0, %s270
    $region4: #{dqn_forward.1} parent=1 // loop_header_branch
      %23 = sbr.rel (%p21) target = $region8
    $region5: #{dqn_forward.1} parent=1 // loop_body
      %s25 = ssub.s32 %s20, 1
      %s26 = ssub.s32 %s20, 2
      %s27 = sadd.s32 %s20, 1
      %s28 = ssub.s32 %s20, %s27
      %p29 = scmp.eq.s32.totalorder %s28, 0
      %s31 = sadd.s32 %s30, 1
      %s32 = scalar_select %p29, %s30, %s31
      %p35 = pneg %p29
      %p36 = scmp.eq.s32.totalorder %s20, 3
      %p37 = por %p35, %p36
      %p38 = scmp.ne.s32.totalorder %s30, %s33
      %p39 = scmp.eq.s32.totalorder %s20, 0
      %p40 = por %p38, %p39
      %p41 = scmp.ne.s32.totalorder %s30, %s33
      %p42 = scmp.eq.s32.totalorder %s25, 3
      %p43 = por %p41, %p42
      %p44 = scmp.ne.s32.totalorder %s33, %s34
      %p45 = scmp.eq.s32.totalorder %s25, 0
      %p46 = por %p44, %p45
      %p47 = scmp.ne.s32.totalorder %s33, %s34
      %p48 = scmp.eq.s32.totalorder %s26, 3
      %p49 = por %p47, %p48
      %p51 = scmp.ne.s32.totalorder %s34, %s50
      %p52 = scmp.eq.s32.totalorder %s26, 0
      %p53 = por %p51, %p52
      %s55 = sadd.s32 %s54, 1
      %p58 = scmp.eq.s32.totalorder %s20, 3
      %p59 = scmp.ne.s32.totalorder %s54, %s56
      %p60 = scmp.eq.s32.totalorder %s20, 0
      %p61 = por %p59, %p60
      %p62 = scmp.ne.s32.totalorder %s54, %s56
      %p63 = scmp.eq.s32.totalorder %s25, 3
      %p64 = por %p62, %p63
      %p65 = scmp.ne.s32.totalorder %s56, %s57
      %p66 = scmp.eq.s32.totalorder %s25, 0
      %p67 = por %p65, %p66
      %p68 = scmp.ne.s32.totalorder %s56, %s57
      %p69 = scmp.eq.s32.totalorder %s26, 3
      %p70 = por %p68, %p69
      %p72 = scmp.ne.s32.totalorder %s57, %s71
      %p73 = scmp.eq.s32.totalorder %s26, 0
      %p74 = por %p72, %p73
      %s76 = sadd.s32 %s75, 1
      %p79 = scmp.eq.s32.totalorder %s20, 3
      %p80 = scmp.ne.s32.totalorder %s75, %s77
      %p81 = scmp.eq.s32.totalorder %s20, 0
      %p82 = por %p80, %p81
      %p83 = scmp.ne.s32.totalorder %s75, %s77
      %p84 = scmp.eq.s32.totalorder %s25, 3
      %p85 = por %p83, %p84
      %p86 = scmp.ne.s32.totalorder %s77, %s78
      %p87 = scmp.eq.s32.totalorder %s25, 0
      %p88 = por %p86, %p87
      %p89 = scmp.ne.s32.totalorder %s77, %s78
      %p90 = scmp.eq.s32.totalorder %s26, 3
      %p91 = por %p89, %p90
      %p93 = scmp.ne.s32.totalorder %s78, %s92
      %p94 = scmp.eq.s32.totalorder %s26, 0
      %p95 = por %p93, %p94
      %s97 = sadd.s32 %s96, 1
      %p100 = scmp.eq.s32.totalorder %s20, 3
      %p101 = scmp.ne.s32.totalorder %s96, %s98
      %p102 = scmp.eq.s32.totalorder %s20, 0
      %p103 = por %p101, %p102
      %p104 = scmp.ne.s32.totalorder %s96, %s98
      %p105 = scmp.eq.s32.totalorder %s25, 3
      %p106 = por %p104, %p105
      %p107 = scmp.ne.s32.totalorder %s98, %s99
      %p108 = scmp.eq.s32.totalorder %s25, 0
      %p109 = por %p107, %p108
      %p110 = scmp.ne.s32.totalorder %s98, %s99
      %p111 = scmp.eq.s32.totalorder %s26, 3
      %p112 = por %p110, %p111
      %p114 = scmp.ne.s32.totalorder %s99, %s113
      %p115 = scmp.eq.s32.totalorder %s26, 0
      %p116 = por %p114, %p115
      %s118 = sadd.s32 %s117, 1
      %p121 = scmp.eq.s32.totalorder %s20, 3
      %p122 = scmp.ne.s32.totalorder %s117, %s119
      %p123 = scmp.eq.s32.totalorder %s20, 0
      %p124 = por %p122, %p123
      %p125 = scmp.ne.s32.totalorder %s117, %s119
      %p126 = scmp.eq.s32.totalorder %s25, 3
      %p127 = por %p125, %p126
      %p128 = scmp.ne.s32.totalorder %s119, %s120
      %p129 = scmp.eq.s32.totalorder %s25, 0
      %p130 = por %p128, %p129
      %p131 = scmp.ne.s32.totalorder %s119, %s120
      %p132 = scmp.eq.s32.totalorder %s26, 3
      %p133 = por %p131, %p132
      %p135 = scmp.ne.s32.totalorder %s120, %s134
      %p136 = scmp.eq.s32.totalorder %s26, 0
      %p137 = por %p135, %p136
      %s139 = sadd.s32 %s138, 1
      %p142 = scmp.eq.s32.totalorder %s20, 3
      %p143 = scmp.ne.s32.totalorder %s138, %s140
      %p144 = scmp.eq.s32.totalorder %s20, 0
      %p145 = por %p143, %p144
      %p146 = scmp.ne.s32.totalorder %s138, %s140
      %p147 = scmp.eq.s32.totalorder %s25, 3
      %p148 = por %p146, %p147
      %p149 = scmp.ne.s32.totalorder %s140, %s141
      %p150 = scmp.eq.s32.totalorder %s25, 0
      %p151 = por %p149, %p150
      %p152 = scmp.ne.s32.totalorder %s140, %s141
      %p153 = scmp.eq.s32.totalorder %s26, 3
      %p154 = por %p152, %p153
      %p156 = scmp.ne.s32.totalorder %s141, %s155
      %p157 = scmp.eq.s32.totalorder %s26, 0
      %p158 = por %p156, %p157
      %s160 = sadd.s32 %s159, 1
      %p163 = scmp.eq.s32.totalorder %s20, 3
      %p164 = scmp.ne.s32.totalorder %s159, %s161
      %p165 = scmp.eq.s32.totalorder %s20, 0
      %p166 = por %p164, %p165
      %p167 = scmp.ne.s32.totalorder %s159, %s161
      %p168 = scmp.eq.s32.totalorder %s25, 3
      %p169 = por %p167, %p168
      %p170 = scmp.ne.s32.totalorder %s161, %s162
      %p171 = scmp.eq.s32.totalorder %s25, 0
      %p172 = por %p170, %p171
      %p173 = scmp.ne.s32.totalorder %s161, %s162
      %p174 = scmp.eq.s32.totalorder %s26, 3
      %p175 = por %p173, %p174
      %p177 = scmp.ne.s32.totalorder %s162, %s176
      %p178 = scmp.eq.s32.totalorder %s26, 0
      %p179 = por %p177, %p178
      %s181 = sadd.s32 %s180, 1
      %p184 = scmp.eq.s32.totalorder %s20, 3
      %p185 = scmp.ne.s32.totalorder %s180, %s182
      %p186 = scmp.eq.s32.totalorder %s20, 0
      %p187 = por %p185, %p186
      %p188 = scmp.ne.s32.totalorder %s180, %s182
      %p189 = scmp.eq.s32.totalorder %s25, 3
      %p190 = por %p188, %p189
      %p191 = scmp.ne.s32.totalorder %s182, %s183
      %p192 = scmp.eq.s32.totalorder %s25, 0
      %p193 = por %p191, %p192
      %p194 = scmp.ne.s32.totalorder %s182, %s183
      %p195 = scmp.eq.s32.totalorder %s26, 3
      %p196 = por %p194, %p195
      %p198 = scmp.ne.s32.totalorder %s183, %s197
      %p199 = scmp.eq.s32.totalorder %s26, 0
      %p200 = por %p198, %p199
      %s202 = sadd.s32 %s201, 1
      %p205 = scmp.eq.s32.totalorder %s20, 3
      %p206 = scmp.ne.s32.totalorder %s201, %s203
      %p207 = scmp.eq.s32.totalorder %s20, 0
      %p208 = por %p206, %p207
      %p209 = scmp.ne.s32.totalorder %s201, %s203
      %p210 = scmp.eq.s32.totalorder %s25, 3
      %p211 = por %p209, %p210
      %p212 = scmp.ne.s32.totalorder %s203, %s204
      %p213 = scmp.eq.s32.totalorder %s25, 0
      %p214 = por %p212, %p213
      %p215 = scmp.ne.s32.totalorder %s203, %s204
      %p216 = scmp.eq.s32.totalorder %s26, 3
      %p217 = por %p215, %p216
      %p219 = scmp.ne.s32.totalorder %s204, %s218
      %p220 = scmp.eq.s32.totalorder %s26, 0
      %p221 = por %p219, %p220
      %s223 = sadd.s32 %s222, 1
      %p226 = scmp.eq.s32.totalorder %s20, 3
      %p227 = scmp.ne.s32.totalorder %s222, %s224
      %p228 = scmp.eq.s32.totalorder %s20, 0
      %p229 = por %p227, %p228
      %p230 = scmp.ne.s32.totalorder %s222, %s224
      %p231 = scmp.eq.s32.totalorder %s25, 3
      %p232 = por %p230, %p231
      %p233 = scmp.ne.s32.totalorder %s224, %s225
      %p234 = scmp.eq.s32.totalorder %s25, 0
      %p235 = por %p233, %p234
      %p236 = scmp.ne.s32.totalorder %s224, %s225
      %p237 = scmp.eq.s32.totalorder %s26, 3
      %p238 = por %p236, %p237
      %p240 = scmp.ne.s32.totalorder %s225, %s239
      %p241 = scmp.eq.s32.totalorder %s26, 0
      %p242 = por %p240, %p241
      %s244 = sadd.s32 %s243, 1
      %p247 = scmp.eq.s32.totalorder %s20, 3
      %p248 = scmp.ne.s32.totalorder %s243, %s245
      %p249 = scmp.eq.s32.totalorder %s20, 0
      %p250 = por %p248, %p249
      %p251 = scmp.ne.s32.totalorder %s243, %s245
      %p252 = scmp.eq.s32.totalorder %s25, 3
      %p253 = por %p251, %p252
      %p254 = scmp.ne.s32.totalorder %s245, %s246
      %p255 = scmp.eq.s32.totalorder %s25, 0
      %p256 = por %p254, %p255
      %p257 = scmp.ne.s32.totalorder %s245, %s246
      %p258 = scmp.eq.s32.totalorder %s26, 3
      %p259 = por %p257, %p258
      %p261 = scmp.ne.s32.totalorder %s246, %s260
      %p262 = scmp.eq.s32.totalorder %s26, 0
      %p263 = por %p261, %p262
      %s264 = ssub.s32 %s20, %s27
      %p265 = scmp.eq.s32.totalorder %s264, 0
      %s267 = sadd.s32 %s266, 1
      %s268 = scalar_select %p265, %s266, %s267
      %p271 = pneg %p265
      %p272 = scmp.eq.s32.totalorder %s20, 3
      %p273 = por %p271, %p272
      %p274 = scmp.ne.s32.totalorder %s266, %s269
      %p275 = scmp.eq.s32.totalorder %s20, 0
      %p276 = por %p274, %p275
      %p277 = scmp.ne.s32.totalorder %s266, %s269
      %p278 = scmp.eq.s32.totalorder %s25, 3
      %p279 = por %p277, %p278
      %p280 = scmp.ne.s32.totalorder %s269, %s270
      %p281 = scmp.eq.s32.totalorder %s25, 0
      %p282 = por %p280, %p281
      %p283 = scmp.ne.s32.totalorder %s269, %s270
      %p284 = scmp.eq.s32.totalorder %s26, 3
      %p285 = por %p283, %p284
      %p287 = scmp.ne.s32.totalorder %s270, %s286
      %p288 = scmp.eq.s32.totalorder %s26, 0
      %p289 = por %p287, %p288
      %p290 = scmp.le.s32.totalorder 1, %s20
      %p291 = scmp.lt.s32.totalorder %s20, 5
      %p292 = pnand %p290, %p291
      %p293 = pneg %p292
      // Predicated region
      $region9: #{dqn_forward.1} parent=5 // pred_check
        _
      $region10: #{dqn_forward.1} parent=5 // pred_check_branch
        %295 = sbr.rel (%p292) target = $region12
      $region11: #{dqn_forward.1} parent=5 // pred_region
        %s296 = ssub.s32 %s20, 1
        // Predicated region
        $region13: #{dqn_forward.1} parent=11 // pred_check
          %p297 = pneg %p67
        $region14: #{dqn_forward.1} parent=11 // pred_check_branch
          %299 = sbr.rel (%p297) target = $region16
        $region15: #{dqn_forward.1} parent=11 // pred_region
          _
        $region16: #{dqn_forward.1} parent=11 // pred_fallthru
          _
        // Predicated region
        $region17: #{dqn_forward.1} parent=11 // pred_check
          %p300 = pneg %p88
        $region18: #{dqn_forward.1} parent=11 // pred_check_branch
          %302 = sbr.rel (%p300) target = $region20
        $region19: #{dqn_forward.1} parent=11 // pred_region
          _
        $region20: #{dqn_forward.1} parent=11 // pred_fallthru
          _
        // Predicated region
        $region21: #{dqn_forward.1} parent=11 // pred_check
          %p303 = pneg %p109
        $region22: #{dqn_forward.1} parent=11 // pred_check_branch
          %305 = sbr.rel (%p303) target = $region24
        $region23: #{dqn_forward.1} parent=11 // pred_region
          %s307 = ssub.s32 4096, 4096
          %308 = vsyncadd [#allocation3], %s307
          %s309 = sshll.u32 [#allocation2], 4
          %s310 = int_to_ptr.vmem [resolvable:$true] %s309
          %315 = dma.hbm_to_vmem [thread:$0]  %s3, 4096, %s310, [#allocation3], 128, 128, 8
        $region24: #{dqn_forward.1} parent=11 // pred_fallthru
          _
        // Predicated region
        $region25: #{dqn_forward.1} parent=11 // pred_check
          %p316 = pneg %p130
        $region26: #{dqn_forward.1} parent=11 // pred_check_branch
          %318 = sbr.rel (%p316) target = $region28
        $region27: #{dqn_forward.1} parent=11 // pred_region
          _
        $region28: #{dqn_forward.1} parent=11 // pred_fallthru
          _
        // Predicated region
        $region29: #{dqn_forward.1} parent=11 // pred_check
          %p319 = pneg %p151
        $region30: #{dqn_forward.1} parent=11 // pred_check_branch
          %321 = sbr.rel (%p319) target = $region32
        $region31: #{dqn_forward.1} parent=11 // pred_region
          %s323 = ssub.s32 4096, 4096
          %324 = vsyncadd [#allocation5], %s323
          %s325 = sshll.u32 [#allocation4], 4
          %s326 = int_to_ptr.vmem [resolvable:$true] %s325
          %331 = dma.hbm_to_vmem [thread:$0]  %s5, 4096, %s326, [#allocation5], 128, 128, 8
        $region32: #{dqn_forward.1} parent=11 // pred_fallthru
          _
        // Predicated region
        $region33: #{dqn_forward.1} parent=11 // pred_check
          %p332 = pneg %p172
        $region34: #{dqn_forward.1} parent=11 // pred_check_branch
          %334 = sbr.rel (%p332) target = $region36
        $region35: #{dqn_forward.1} parent=11 // pred_region
          _
        $region36: #{dqn_forward.1} parent=11 // pred_fallthru
          _
        // Predicated region
        $region37: #{dqn_forward.1} parent=11 // pred_check
          %p335 = pneg %p193
        $region38: #{dqn_forward.1} parent=11 // pred_check_branch
          %337 = sbr.rel (%p335) target = $region40
        $region39: #{dqn_forward.1} parent=11 // pred_region
          %s339 = ssub.s32 4096, 4096
          %340 = vsyncadd [#allocation5], %s339
          %s341 = sshll.u32 [#allocation6], 4
          %s342 = int_to_ptr.vmem [resolvable:$true] %s341
          %347 = dma.hbm_to_vmem [thread:$0]  %s7, 4096, %s342, [#allocation5], 128, 128, 8
        $region40: #{dqn_forward.1} parent=11 // pred_fallthru
          _
        // Predicated region
        $region41: #{dqn_forward.1} parent=11 // pred_check
          %p348 = pneg %p214
        $region42: #{dqn_forward.1} parent=11 // pred_check_branch
          %350 = sbr.rel (%p348) target = $region44
        $region43: #{dqn_forward.1} parent=11 // pred_region
          _
        $region44: #{dqn_forward.1} parent=11 // pred_fallthru
          _
        // Predicated region
        $region45: #{dqn_forward.1} parent=11 // pred_check
          %p351 = pneg %p235
        $region46: #{dqn_forward.1} parent=11 // pred_check_branch
          %353 = sbr.rel (%p351) target = $region48
        $region47: #{dqn_forward.1} parent=11 // pred_region
          %s355 = ssub.s32 2048, 2048
          %356 = vsyncadd [#allocation8], %s355
          %s357 = sshll.u32 [#allocation7], 4
          %s358 = int_to_ptr.vmem [resolvable:$true] %s357
          %363 = dma.hbm_to_vmem [thread:$0]  %s9, 2048, %s358, [#allocation8], 64, 64, 4
        $region48: #{dqn_forward.1} parent=11 // pred_fallthru
          _
        // Predicated region
        $region49: #{dqn_forward.1} parent=11 // pred_check
          %p364 = pneg %p256
        $region50: #{dqn_forward.1} parent=11 // pred_check_branch
          %366 = sbr.rel (%p364) target = $region52
        $region51: #{dqn_forward.1} parent=11 // pred_region
          _
        $region52: #{dqn_forward.1} parent=11 // pred_fallthru
          _
      $region12: #{dqn_forward.1} parent=5 // pred_fallthru
        _
      %p367 = scmp.lt.s32.totalorder %s20, 4
      // Predicated region
      $region53: #{dqn_forward.1} parent=5 // pred_check
        %p368 = pneg %p367
      $region54: #{dqn_forward.1} parent=5 // pred_check_branch
        %370 = sbr.rel (%p368) target = $region56
      $region55: #{dqn_forward.1} parent=5 // pred_region
        // Predicated region
        $region57: #{dqn_forward.1} parent=55 // pred_check
          %p371 = pneg %p40
        $region58: #{dqn_forward.1} parent=55 // pred_check_branch
          %373 = sbr.rel (%p371) target = $region60
        $region59: #{dqn_forward.1} parent=55 // pred_region
          %s374 = smul.u32 4, %s20
          %p375 = scmp.lt.s32.totalorder %s374, 15
          %s376 = scalar_select %p375, %s374, 15
          %s377 = smul.addr %s376, 4
          %s378 = scalar_lea.vmem %s0, %s377
          %s379 = smul.u32 4, %s20
        $region60: #{dqn_forward.1} parent=55 // pred_fallthru
          _
      $region56: #{dqn_forward.1} parent=5 // pred_fallthru
        _
      %p380 = scmp.le.s32.totalorder 1, %s20
      %p381 = scmp.lt.s32.totalorder %s20, 5
      %p382 = pnand %p380, %p381
      %p383 = pneg %p382
      // Predicated region
      $region61: #{dqn_forward.1} parent=5 // pred_check
        _
      $region62: #{dqn_forward.1} parent=5 // pred_check_branch
        %385 = sbr.rel (%p382) target = $region64
      $region63: #{dqn_forward.1} parent=5 // pred_region
        %s386 = ssub.s32 %s20, 1
        // Predicated region
        $region65: #{dqn_forward.1} parent=63 // pred_check
          %p387 = pneg %p109
        $region66: #{dqn_forward.1} parent=63 // pred_check_branch
          %389 = sbr.rel (%p387) target = $region68
        $region67: #{dqn_forward.1} parent=63 // pred_region
          %390 = dma.done [#allocation3], 4096
        $region68: #{dqn_forward.1} parent=63 // pred_fallthru
          _
        // Predicated region
        $region69: #{dqn_forward.1} parent=63 // pred_check
          %p391 = pneg %p151
        $region70: #{dqn_forward.1} parent=63 // pred_check_branch
          %393 = sbr.rel (%p391) target = $region72
        $region71: #{dqn_forward.1} parent=63 // pred_region
          %394 = dma.done [#allocation5], 4096
        $region72: #{dqn_forward.1} parent=63 // pred_fallthru
          _
        // Predicated region
        $region73: #{dqn_forward.1} parent=63 // pred_check
          %p395 = pneg %p193
        $region74: #{dqn_forward.1} parent=63 // pred_check_branch
          %397 = sbr.rel (%p395) target = $region76
        $region75: #{dqn_forward.1} parent=63 // pred_region
          %398 = dma.done [#allocation5], 4096
        $region76: #{dqn_forward.1} parent=63 // pred_fallthru
          _
        // Predicated region
        $region77: #{dqn_forward.1} parent=63 // pred_check
          %p399 = pneg %p235
        $region78: #{dqn_forward.1} parent=63 // pred_check_branch
          %401 = sbr.rel (%p399) target = $region80
        $region79: #{dqn_forward.1} parent=63 // pred_region
          %402 = dma.done [#allocation8], 2048
        $region80: #{dqn_forward.1} parent=63 // pred_fallthru
          _
        %s403 = smul.u32 4, %s25
        %p404 = scmp.lt.s32.totalorder %s403, 15
        %s405 = scalar_select %p404, %s403, 15
        %s406 = smul.addr %s405, 4
        %s407 = scalar_lea.vmem %s0, %s406
        %p408 = pneg %p46
        %p409 = pneg %p43
        %p410 = pneg %p67
        %p411 = pneg %p64
        %p412 = pneg %p88
        %p413 = pneg %p85
        %p414 = pneg %p109
        %p415 = pneg %p106
        %p416 = pneg %p130
        %p417 = pneg %p127
        %p418 = pneg %p151
        %p419 = pneg %p148
        %p420 = pneg %p172
        %p421 = pneg %p169
        %p422 = pneg %p193
        %p423 = pneg %p190
        %p424 = pneg %p214
        %p425 = pneg %p211
        %p426 = pneg %p235
        %p427 = pneg %p232
        %p428 = pneg %p256
        %p429 = pneg %p253
        %p430 = pneg %p282
        %p431 = pneg %p279
        %s432 = smul.u32 4, %s25
        %p433 = scmp.lt.s32.totalorder %s432, 15
        %s434 = scalar_select %p433, %s432, 15
        %s435 = smul.addr %s434, 4
        %s436 = scalar_lea.vmem %s11, %s435
        %s437 = smul.u32 4, %s25
        %p438 = scmp.lt.s32.totalorder %s437, 15
        %s439 = scalar_select %p438, %s437, 15
        %s440 = smul.addr %s439, 4
        %s441 = scalar_lea.vmem %s0, %s440
        %s442 = smul.u32 4, %s25
        %s443 = smul.u32 4, %s25
        %p444 = scmp.lt.s32.totalorder %s443, 15
        %s445 = scalar_select %p444, %s443, 15
        %s446 = smul.addr %s445, 4
        %s447 = scalar_lea.vmem %s11, %s446
        %s448 = smul.u32 4, %s25
        %v450 = vld [vmem:[%s441] sm:$0xf]
        %v451 = vld [vmem:[%s441 + $0x4] sm:$0xf]
        %v452 = vld [vmem:[%s441 + $0x8] sm:$0xf]
        %v453 = vld [vmem:[%s441 + $0xc] sm:$0xf]
        %v454 = vld [vmem:[%s1] sm:$0xf]
        %v455 = vld [vmem:[%s2] sm:$0x3]
        %v456 = vunpack.c.l.bf16 %v455
        %v458 = vlaneseq
        %v459 = vshrl.u32 %v458, 7
        %v460 = vsub.s32 0, %v459
        %v461 = vrot.slane %v456, %v460
        %v462 = vlaneseq
        %v463 = vshrl.u32 %v462, 7
        %v464 = vsub.s32 2, %v463
        %v465 = vrot.slane %v456, %v464
        %v468 = vlaneseq
        %v469 = vshrl.u32 %v468, 7
        %v470 = vsub.s32 0, %v469
        %v471 = vrot.slane %v461, %v470
        %v472 = vlaneseq
        %v473 = vshrl.u32 %v472, 7
        %v474 = vsub.s32 0, %v473
        %v475 = vrot.slane %v465, %v474
        %v480 = vunpack.c.l.b16 %v450
        %v481 = vunpack.c.l.b16 %v451
        %v482 = vunpack.c.l.b16 %v452
        %v483 = vunpack.c.l.b16 %v453
        %v484 = vpack.c.b16 %v481, %v480
        %v485 = vpack.c.b16 %v483, %v482
        %v488 = vunpack.c.l.s4 1983009808
        %v489 = vunpack.c.0.s8 %v488
        %v490 = vlaneseq
        %v491 = vshrl.u32 %v490, 7
        %v492 = vsub.s32 %v489, %v491
        %v493 = vrot.slane %v454, %v492
        %v494 = vcombine.high %v493, %v493
        %vm495 = vcmask 31744
        %v497 = vsel %vm495, %v484, 0
        %v500 = vsel %vm495, %v485, 0
        %vm502 = vcmask 1041408
        %v504 = vsel %vm502, %v493, 0
        %v507 = vsel %vm502, %v494, 0
        %509 = vmatprep.subr.bf16.mxu0 %v507
        %510 = vmatpush1.bf16.msra.mxu0 %v504
        %511 = vmatprep.subr.bf16.mxu0 0
        %512 = vmatpush1.bf16.msra.mxu0 0
        %513 = vmatprep.subr.bf16.mxu0 0
        %514 = vmatpush1.bf16.msra.mxu0 0
        %515 = vmatprep.subr.bf16.mxu0 0
        %516 = vmatpush1.bf16.msra.mxu0 0
        %517 = vmatprep.subr.bf16.mxu0 0
        %518 = vmatpush1.bf16.msra.mxu0 0
        %519 = vmatprep.subr.bf16.mxu0 0
        %520 = vmatpush1.bf16.msra.mxu0 0
        %521 = vmatprep.subr.bf16.mxu0 0
        %522 = vmatpush1.bf16.msra.mxu0 0
        %523 = vmatprep.subr.bf16.mxu0 0
        %524 = vmatpush1.bf16.msra.mxu0 0
        %525 = vmatprep.subr.bf16.mxu0 0
        %526 = vmatpush1.bf16.msra.mxu0 0
        %527 = vmatprep.subr.bf16.mxu0 0
        %528 = vmatpush1.bf16.msra.mxu0 0
        %529 = vmatprep.subr.bf16.mxu0 0
        %530 = vmatpush1.bf16.msra.mxu0 0
        %531 = vmatprep.subr.bf16.mxu0 0
        %532 = vmatpush1.bf16.msra.mxu0 0
        %533 = vmatprep.subr.bf16.mxu0 0
        %534 = vmatpush1.bf16.msra.mxu0 0
        %535 = vmatprep.subr.bf16.mxu0 0
        %536 = vmatpush1.bf16.msra.mxu0 0
        %537 = vmatprep.subr.bf16.mxu0 0
        %538 = vmatpush1.bf16.msra.mxu0 0
        %539 = vmatprep.subr.bf16.mxu0 0
        %540 = vmatpush1.bf16.msra.mxu0 0
        %541 = vmatprep.mubr.bf16.mxu0 0
        %542 = vmatmul.mubr.bf16.gmra.mrb[0].mxu0 %v497
        %v543 = vpop.f32.mrb[0].mxu0
        %v544 = vadd.f32 %v471, %v543
        %v545 = vpop.f32.mrb[0].mxu0
        %v546 = vadd.f32 %v475, %v545
        %v547 = vpop.f32.mrb[0].mxu0
        %v548 = vadd.f32 %v471, %v547
        %v549 = vpop.f32.mrb[0].mxu0
        %v550 = vadd.f32 %v475, %v549
        %551 = vmatprep.mubr.bf16.mxu0 0
        %552 = vmatmul.mubr.bf16.gmra.mrb[0].mxu0 %v500
        %v553 = vpop.f32.mrb[0].mxu0
        %v554 = vadd.f32 %v471, %v553
        %v555 = vpop.f32.mrb[0].mxu0
        %v556 = vadd.f32 %v475, %v555
        %v557 = vpop.f32.mrb[0].mxu0
        %v558 = vadd.f32 %v471, %v557
        %v559 = vpop.f32.mrb[0].mxu0
        %v560 = vadd.f32 %v475, %v559
        %561 = vdwg.mxu0
        %v562 = vpack.c.bf16 %v548, %v544
        %v563 = vpack.c.bf16 %v550, %v546
        %v564 = vpack.c.bf16 %v558, %v554
        %v565 = vpack.c.bf16 %v560, %v556
        %v566 = vmax.bf16 %v562, 0
        %v567 = vmax.bf16 %v563, 0
        %v568 = vmax.bf16 %v564, 0
        %v569 = vmax.bf16 %v565, 0
        %v570 = vld [vmem:[#allocation2] sm:$0xff]
        %v571 = vld [vmem:[#allocation2 + $0x8] sm:$0xff]
        %v572 = vld [vmem:[#allocation2 + $0x10] sm:$0xff]
        %v573 = vld [vmem:[#allocation2 + $0x18] sm:$0xff]
        %v574 = vld [vmem:[#allocation2 + $0x20] sm:$0xff]
        %v575 = vld [vmem:[#allocation2 + $0x28] sm:$0xff]
        %v576 = vld [vmem:[#allocation2 + $0x30] sm:$0xff]
        %v577 = vld [vmem:[#allocation2 + $0x38] sm:$0xff]
        %v578 = vld [vmem:[#allocation2 + $0x40] sm:$0xff]
        %v579 = vld [vmem:[#allocation2 + $0x48] sm:$0xff]
        %v580 = vld [vmem:[#allocation2 + $0x50] sm:$0xff]
        %v581 = vld [vmem:[#allocation2 + $0x58] sm:$0xff]
        %v582 = vld [vmem:[#allocation2 + $0x60] sm:$0xff]
        %v583 = vld [vmem:[#allocation2 + $0x68] sm:$0xff]
        %v584 = vld [vmem:[#allocation2 + $0x70] sm:$0xff]
        %v585 = vld [vmem:[#allocation2 + $0x78] sm:$0xff]
        %v586 = vld [vmem:[#allocation2 + $0x80] sm:$0xff]
        %v587 = vld [vmem:[#allocation2 + $0x88] sm:$0xff]
        %v588 = vld [vmem:[#allocation2 + $0x90] sm:$0xff]
        %v589 = vld [vmem:[#allocation2 + $0x98] sm:$0xff]
        %v590 = vld [vmem:[#allocation2 + $0xa0] sm:$0xff]
        %v591 = vld [vmem:[#allocation2 + $0xa8] sm:$0xff]
        %v592 = vld [vmem:[#allocation2 + $0xb0] sm:$0xff]
        %v593 = vld [vmem:[#allocation2 + $0xb8] sm:$0xff]
        %v594 = vld [vmem:[#allocation2 + $0xc0] sm:$0xff]
        %v595 = vld [vmem:[#allocation2 + $0xc8] sm:$0xff]
        %v596 = vld [vmem:[#allocation2 + $0xd0] sm:$0xff]
        %v597 = vld [vmem:[#allocation2 + $0xd8] sm:$0xff]
        %v598 = vld [vmem:[#allocation2 + $0xe0] sm:$0xff]
        %v599 = vld [vmem:[#allocation2 + $0xe8] sm:$0xff]
        %v600 = vld [vmem:[#allocation2 + $0xf0] sm:$0xff]
        %v601 = vld [vmem:[#allocation2 + $0xf8] sm:$0xff]
        %v602 = vld [vmem:[%s4] sm:$0x3]
        %v603 = vunpack.c.l.bf16 %v602
        %v605 = vlaneseq
        %v606 = vshrl.u32 %v605, 7
        %v607 = vsub.s32 0, %v606
        %v608 = vrot.slane %v603, %v607
        %v609 = vlaneseq
        %v610 = vshrl.u32 %v609, 7
        %v611 = vsub.s32 2, %v610
        %v612 = vrot.slane %v603, %v611
        %v615 = vlaneseq
        %v616 = vshrl.u32 %v615, 7
        %v617 = vsub.s32 0, %v616
        %v618 = vrot.slane %v608, %v617
        %v619 = vlaneseq
        %v620 = vshrl.u32 %v619, 7
        %v621 = vsub.s32 0, %v620
        %v622 = vrot.slane %v612, %v621
        %v655 = vunpack.c.l.b16 %v570
        %v656 = vunpack.c.h.b16 %v570
        %v657 = vunpack.c.l.b16 %v571
        %v658 = vunpack.c.h.b16 %v571
        %v659 = vunpack.c.l.b16 %v572
        %v660 = vunpack.c.h.b16 %v572
        %v661 = vunpack.c.l.b16 %v573
        %v662 = vunpack.c.h.b16 %v573
        %v663 = vunpack.c.l.b16 %v574
        %v664 = vunpack.c.h.b16 %v574
        %v665 = vunpack.c.l.b16 %v575
        %v666 = vunpack.c.h.b16 %v575
        %v667 = vunpack.c.l.b16 %v576
        %v668 = vunpack.c.h.b16 %v576
        %v669 = vunpack.c.l.b16 %v577
        %v670 = vunpack.c.h.b16 %v577
        %v671 = vunpack.c.l.b16 %v578
        %v672 = vunpack.c.h.b16 %v578
        %v673 = vunpack.c.l.b16 %v579
        %v674 = vunpack.c.h.b16 %v579
        %v675 = vunpack.c.l.b16 %v580
        %v676 = vunpack.c.h.b16 %v580
        %v677 = vunpack.c.l.b16 %v581
        %v678 = vunpack.c.h.b16 %v581
        %v679 = vunpack.c.l.b16 %v582
        %v680 = vunpack.c.h.b16 %v582
        %v681 = vunpack.c.l.b16 %v583
        %v682 = vunpack.c.h.b16 %v583
        %v683 = vunpack.c.l.b16 %v584
        %v684 = vunpack.c.h.b16 %v584
        %v685 = vunpack.c.l.b16 %v585
        %v686 = vunpack.c.h.b16 %v585
        %v687 = vunpack.c.l.b16 %v586
        %v688 = vunpack.c.h.b16 %v586
        %v689 = vunpack.c.l.b16 %v587
        %v690 = vunpack.c.h.b16 %v587
        %v691 = vunpack.c.l.b16 %v588
        %v692 = vunpack.c.h.b16 %v588
        %v693 = vunpack.c.l.b16 %v589
        %v694 = vunpack.c.h.b16 %v589
        %v695 = vunpack.c.l.b16 %v590
        %v696 = vunpack.c.h.b16 %v590
        %v697 = vunpack.c.l.b16 %v591
        %v698 = vunpack.c.h.b16 %v591
        %v699 = vunpack.c.l.b16 %v592
        %v700 = vunpack.c.h.b16 %v592
        %v701 = vunpack.c.l.b16 %v593
        %v702 = vunpack.c.h.b16 %v593
        %v703 = vunpack.c.l.b16 %v594
        %v704 = vunpack.c.h.b16 %v594
        %v705 = vunpack.c.l.b16 %v595
        %v706 = vunpack.c.h.b16 %v595
        %v707 = vunpack.c.l.b16 %v596
        %v708 = vunpack.c.h.b16 %v596
        %v709 = vunpack.c.l.b16 %v597
        %v710 = vunpack.c.h.b16 %v597
        %v711 = vunpack.c.l.b16 %v598
        %v712 = vunpack.c.h.b16 %v598
        %v713 = vunpack.c.l.b16 %v599
        %v714 = vunpack.c.h.b16 %v599
        %v715 = vunpack.c.l.b16 %v600
        %v716 = vunpack.c.h.b16 %v600
        %v717 = vunpack.c.l.b16 %v601
        %v718 = vunpack.c.h.b16 %v601
        %v719 = vpack.c.b16 %v657, %v655
        %v720 = vpack.c.b16 %v658, %v656
        %v721 = vpack.c.b16 %v661, %v659
        %v722 = vpack.c.b16 %v662, %v660
        %v723 = vpack.c.b16 %v665, %v663
        %v724 = vpack.c.b16 %v666, %v664
        %v725 = vpack.c.b16 %v669, %v667
        %v726 = vpack.c.b16 %v670, %v668
        %v727 = vpack.c.b16 %v673, %v671
        %v728 = vpack.c.b16 %v674, %v672
        %v729 = vpack.c.b16 %v677, %v675
        %v730 = vpack.c.b16 %v678, %v676
        %v731 = vpack.c.b16 %v681, %v679
        %v732 = vpack.c.b16 %v682, %v680
        %v733 = vpack.c.b16 %v685, %v683
        %v734 = vpack.c.b16 %v686, %v684
        %v735 = vpack.c.b16 %v689, %v687
        %v736 = vpack.c.b16 %v690, %v688
        %v737 = vpack.c.b16 %v693, %v691
        %v738 = vpack.c.b16 %v694, %v692
        %v739 = vpack.c.b16 %v697, %v695
        %v740 = vpack.c.b16 %v698, %v696
        %v741 = vpack.c.b16 %v701, %v699
        %v742 = vpack.c.b16 %v702, %v700
        %v743 = vpack.c.b16 %v705, %v703
        %v744 = vpack.c.b16 %v706, %v704
        %v745 = vpack.c.b16 %v709, %v707
        %v746 = vpack.c.b16 %v710, %v708
        %v747 = vpack.c.b16 %v713, %v711
        %v748 = vpack.c.b16 %v714, %v712
        %v749 = vpack.c.b16 %v717, %v715
        %v750 = vpack.c.b16 %v718, %v716
        %783 = vmatprep.subr.bf16.mxu0 %v720
        %784 = vmatpush1.bf16.msra.mxu0 %v719
        %785 = vmatprep.subr.bf16.mxu0 %v722
        %786 = vmatpush1.bf16.msra.mxu0 %v721
        %787 = vmatprep.subr.bf16.mxu0 %v724
        %788 = vmatpush1.bf16.msra.mxu0 %v723
        %789 = vmatprep.subr.bf16.mxu0 %v726
        %790 = vmatpush1.bf16.msra.mxu0 %v725
        %791 = vmatprep.subr.bf16.mxu0 %v728
        %792 = vmatpush1.bf16.msra.mxu0 %v727
        %793 = vmatprep.subr.bf16.mxu0 %v730
        %794 = vmatpush1.bf16.msra.mxu0 %v729
        %795 = vmatprep.subr.bf16.mxu0 %v732
        %796 = vmatpush1.bf16.msra.mxu0 %v731
        %797 = vmatprep.subr.bf16.mxu0 %v734
        %798 = vmatpush1.bf16.msra.mxu0 %v733
        %799 = vmatprep.subr.bf16.mxu0 %v736
        %800 = vmatpush1.bf16.msra.mxu0 %v735
        %801 = vmatprep.subr.bf16.mxu0 %v738
        %802 = vmatpush1.bf16.msra.mxu0 %v737
        %803 = vmatprep.subr.bf16.mxu0 %v740
        %804 = vmatpush1.bf16.msra.mxu0 %v739
        %805 = vmatprep.subr.bf16.mxu0 %v742
        %806 = vmatpush1.bf16.msra.mxu0 %v741
        %807 = vmatprep.subr.bf16.mxu0 %v744
        %808 = vmatpush1.bf16.msra.mxu0 %v743
        %809 = vmatprep.subr.bf16.mxu0 %v746
        %810 = vmatpush1.bf16.msra.mxu0 %v745
        %811 = vmatprep.subr.bf16.mxu0 %v748
        %812 = vmatpush1.bf16.msra.mxu0 %v747
        %813 = vmatprep.subr.bf16.mxu0 %v750
        %814 = vmatpush1.bf16.msra.mxu0 %v749
        %815 = vmatprep.mubr.bf16.mxu0 %v567
        %816 = vmatmul.mubr.bf16.gmra.mrb[0].mxu0 %v566
        %v817 = vpop.f32.mrb[0].mxu0
        %v818 = vadd.f32 %v618, %v817
        %v819 = vpop.f32.mrb[0].mxu0
        %v820 = vadd.f32 %v622, %v819
        %v821 = vpop.f32.mrb[0].mxu0
        %v822 = vadd.f32 %v618, %v821
        %v823 = vpop.f32.mrb[0].mxu0
        %v824 = vadd.f32 %v622, %v823
        %825 = vmatprep.mubr.bf16.mxu0 %v569
        %826 = vmatmul.mubr.bf16.gmra.mrb[0].mxu0 %v568
        %v827 = vpop.f32.mrb[0].mxu0
        %v828 = vadd.f32 %v618, %v827
        %v829 = vpop.f32.mrb[0].mxu0
        %v830 = vadd.f32 %v622, %v829
        %v831 = vpop.f32.mrb[0].mxu0
        %v832 = vadd.f32 %v618, %v831
        %v833 = vpop.f32.mrb[0].mxu0
        %v834 = vadd.f32 %v622, %v833
        %835 = vdwg.mxu0
        %v836 = vpack.c.bf16 %v822, %v818
        %v837 = vpack.c.bf16 %v824, %v820
        %v838 = vpack.c.bf16 %v832, %v828
        %v839 = vpack.c.bf16 %v834, %v830
        %v840 = vmax.bf16 %v836, 0
        %v841 = vmax.bf16 %v837, 0
        %v842 = vmax.bf16 %v838, 0
        %v843 = vmax.bf16 %v839, 0
        %v844 = vld [vmem:[#allocation4] sm:$0xff]
        %v845 = vld [vmem:[#allocation4 + $0x8] sm:$0xff]
        %v846 = vld [vmem:[#allocation4 + $0x10] sm:$0xff]
        %v847 = vld [vmem:[#allocation4 + $0x18] sm:$0xff]
        %v848 = vld [vmem:[#allocation4 + $0x20] sm:$0xff]
        %v849 = vld [vmem:[#allocation4 + $0x28] sm:$0xff]
        %v850 = vld [vmem:[#allocation4 + $0x30] sm:$0xff]
        %v851 = vld [vmem:[#allocation4 + $0x38] sm:$0xff]
        %v852 = vld [vmem:[#allocation4 + $0x40] sm:$0xff]
        %v853 = vld [vmem:[#allocation4 + $0x48] sm:$0xff]
        %v854 = vld [vmem:[#allocation4 + $0x50] sm:$0xff]
        %v855 = vld [vmem:[#allocation4 + $0x58] sm:$0xff]
        %v856 = vld [vmem:[#allocation4 + $0x60] sm:$0xff]
        %v857 = vld [vmem:[#allocation4 + $0x68] sm:$0xff]
        %v858 = vld [vmem:[#allocation4 + $0x70] sm:$0xff]
        %v859 = vld [vmem:[#allocation4 + $0x78] sm:$0xff]
        %v860 = vld [vmem:[#allocation4 + $0x80] sm:$0xff]
        %v861 = vld [vmem:[#allocation4 + $0x88] sm:$0xff]
        %v862 = vld [vmem:[#allocation4 + $0x90] sm:$0xff]
        %v863 = vld [vmem:[#allocation4 + $0x98] sm:$0xff]
        %v864 = vld [vmem:[#allocation4 + $0xa0] sm:$0xff]
        %v865 = vld [vmem:[#allocation4 + $0xa8] sm:$0xff]
        %v866 = vld [vmem:[#allocation4 + $0xb0] sm:$0xff]
        %v867 = vld [vmem:[#allocation4 + $0xb8] sm:$0xff]
        %v868 = vld [vmem:[#allocation4 + $0xc0] sm:$0xff]
        %v869 = vld [vmem:[#allocation4 + $0xc8] sm:$0xff]
        %v870 = vld [vmem:[#allocation4 + $0xd0] sm:$0xff]
        %v871 = vld [vmem:[#allocation4 + $0xd8] sm:$0xff]
        %v872 = vld [vmem:[#allocation4 + $0xe0] sm:$0xff]
        %v873 = vld [vmem:[#allocation4 + $0xe8] sm:$0xff]
        %v874 = vld [vmem:[#allocation4 + $0xf0] sm:$0xff]
        %v875 = vld [vmem:[#allocation4 + $0xf8] sm:$0xff]
        %v876 = vld [vmem:[%s6] sm:$0x3]
        %v877 = vunpack.c.l.bf16 %v876
        %v879 = vlaneseq
        %v880 = vshrl.u32 %v879, 7
        %v881 = vsub.s32 0, %v880
        %v882 = vrot.slane %v877, %v881
        %v883 = vlaneseq
        %v884 = vshrl.u32 %v883, 7
        %v885 = vsub.s32 2, %v884
        %v886 = vrot.slane %v877, %v885
        %v889 = vlaneseq
        %v890 = vshrl.u32 %v889, 7
        %v891 = vsub.s32 0, %v890
        %v892 = vrot.slane %v882, %v891
        %v893 = vlaneseq
        %v894 = vshrl.u32 %v893, 7
        %v895 = vsub.s32 0, %v894
        %v896 = vrot.slane %v886, %v895
        %v929 = vunpack.c.l.b16 %v844
        %v930 = vunpack.c.h.b16 %v844
        %v931 = vunpack.c.l.b16 %v845
        %v932 = vunpack.c.h.b16 %v845
        %v933 = vunpack.c.l.b16 %v846
        %v934 = vunpack.c.h.b16 %v846
        %v935 = vunpack.c.l.b16 %v847
        %v936 = vunpack.c.h.b16 %v847
        %v937 = vunpack.c.l.b16 %v848
        %v938 = vunpack.c.h.b16 %v848
        %v939 = vunpack.c.l.b16 %v849
        %v940 = vunpack.c.h.b16 %v849
        %v941 = vunpack.c.l.b16 %v850
        %v942 = vunpack.c.h.b16 %v850
        %v943 = vunpack.c.l.b16 %v851
        %v944 = vunpack.c.h.b16 %v851
        %v945 = vunpack.c.l.b16 %v852
        %v946 = vunpack.c.h.b16 %v852
        %v947 = vunpack.c.l.b16 %v853
        %v948 = vunpack.c.h.b16 %v853
        %v949 = vunpack.c.l.b16 %v854
        %v950 = vunpack.c.h.b16 %v854
        %v951 = vunpack.c.l.b16 %v855
        %v952 = vunpack.c.h.b16 %v855
        %v953 = vunpack.c.l.b16 %v856
        %v954 = vunpack.c.h.b16 %v856
        %v955 = vunpack.c.l.b16 %v857
        %v956 = vunpack.c.h.b16 %v857
        %v957 = vunpack.c.l.b16 %v858
        %v958 = vunpack.c.h.b16 %v858
        %v959 = vunpack.c.l.b16 %v859
        %v960 = vunpack.c.h.b16 %v859
        %v961 = vunpack.c.l.b16 %v860
        %v962 = vunpack.c.h.b16 %v860
        %v963 = vunpack.c.l.b16 %v861
        %v964 = vunpack.c.h.b16 %v861
        %v965 = vunpack.c.l.b16 %v862
        %v966 = vunpack.c.h.b16 %v862
        %v967 = vunpack.c.l.b16 %v863
        %v968 = vunpack.c.h.b16 %v863
        %v969 = vunpack.c.l.b16 %v864
        %v970 = vunpack.c.h.b16 %v864
        %v971 = vunpack.c.l.b16 %v865
        %v972 = vunpack.c.h.b16 %v865
        %v973 = vunpack.c.l.b16 %v866
        %v974 = vunpack.c.h.b16 %v866
        %v975 = vunpack.c.l.b16 %v867
        %v976 = vunpack.c.h.b16 %v867
        %v977 = vunpack.c.l.b16 %v868
        %v978 = vunpack.c.h.b16 %v868
        %v979 = vunpack.c.l.b16 %v869
        %v980 = vunpack.c.h.b16 %v869
        %v981 = vunpack.c.l.b16 %v870
        %v982 = vunpack.c.h.b16 %v870
        %v983 = vunpack.c.l.b16 %v871
        %v984 = vunpack.c.h.b16 %v871
        %v985 = vunpack.c.l.b16 %v872
        %v986 = vunpack.c.h.b16 %v872
        %v987 = vunpack.c.l.b16 %v873
        %v988 = vunpack.c.h.b16 %v873
        %v989 = vunpack.c.l.b16 %v874
        %v990 = vunpack.c.h.b16 %v874
        %v991 = vunpack.c.l.b16 %v875
        %v992 = vunpack.c.h.b16 %v875
        %v993 = vpack.c.b16 %v931, %v929
        %v994 = vpack.c.b16 %v932, %v930
        %v995 = vpack.c.b16 %v935, %v933
        %v996 = vpack.c.b16 %v936, %v934
        %v997 = vpack.c.b16 %v939, %v937
        %v998 = vpack.c.b16 %v940, %v938
        %v999 = vpack.c.b16 %v943, %v941
        %v1000 = vpack.c.b16 %v944, %v942
        %v1001 = vpack.c.b16 %v947, %v945
        %v1002 = vpack.c.b16 %v948, %v946
        %v1003 = vpack.c.b16 %v951, %v949
        %v1004 = vpack.c.b16 %v952, %v950
        %v1005 = vpack.c.b16 %v955, %v953
        %v1006 = vpack.c.b16 %v956, %v954
        %v1007 = vpack.c.b16 %v959, %v957
        %v1008 = vpack.c.b16 %v960, %v958
        %v1009 = vpack.c.b16 %v963, %v961
        %v1010 = vpack.c.b16 %v964, %v962
        %v1011 = vpack.c.b16 %v967, %v965
        %v1012 = vpack.c.b16 %v968, %v966
        %v1013 = vpack.c.b16 %v971, %v969
        %v1014 = vpack.c.b16 %v972, %v970
        %v1015 = vpack.c.b16 %v975, %v973
        %v1016 = vpack.c.b16 %v976, %v974
        %v1017 = vpack.c.b16 %v979, %v977
        %v1018 = vpack.c.b16 %v980, %v978
        %v1019 = vpack.c.b16 %v983, %v981
        %v1020 = vpack.c.b16 %v984, %v982
        %v1021 = vpack.c.b16 %v987, %v985
        %v1022 = vpack.c.b16 %v988, %v986
        %v1023 = vpack.c.b16 %v991, %v989
        %v1024 = vpack.c.b16 %v992, %v990
        %1057 = vmatprep.subr.bf16.mxu0 %v994
        %1058 = vmatpush1.bf16.msra.mxu0 %v993
        %1059 = vmatprep.subr.bf16.mxu0 %v996
        %1060 = vmatpush1.bf16.msra.mxu0 %v995
        %1061 = vmatprep.subr.bf16.mxu0 %v998
        %1062 = vmatpush1.bf16.msra.mxu0 %v997
        %1063 = vmatprep.subr.bf16.mxu0 %v1000
        %1064 = vmatpush1.bf16.msra.mxu0 %v999
        %1065 = vmatprep.subr.bf16.mxu0 %v1002
        %1066 = vmatpush1.bf16.msra.mxu0 %v1001
        %1067 = vmatprep.subr.bf16.mxu0 %v1004
        %1068 = vmatpush1.bf16.msra.mxu0 %v1003
        %1069 = vmatprep.subr.bf16.mxu0 %v1006
        %1070 = vmatpush1.bf16.msra.mxu0 %v1005
        %1071 = vmatprep.subr.bf16.mxu0 %v1008
        %1072 = vmatpush1.bf16.msra.mxu0 %v1007
        %1073 = vmatprep.subr.bf16.mxu0 %v1010
        %1074 = vmatpush1.bf16.msra.mxu0 %v1009
        %1075 = vmatprep.subr.bf16.mxu0 %v1012
        %1076 = vmatpush1.bf16.msra.mxu0 %v1011
        %1077 = vmatprep.subr.bf16.mxu0 %v1014
        %1078 = vmatpush1.bf16.msra.mxu0 %v1013
        %1079 = vmatprep.subr.bf16.mxu0 %v1016
        %1080 = vmatpush1.bf16.msra.mxu0 %v1015
        %1081 = vmatprep.subr.bf16.mxu0 %v1018
        %1082 = vmatpush1.bf16.msra.mxu0 %v1017
        %1083 = vmatprep.subr.bf16.mxu0 %v1020
        %1084 = vmatpush1.bf16.msra.mxu0 %v1019
        %1085 = vmatprep.subr.bf16.mxu0 %v1022
        %1086 = vmatpush1.bf16.msra.mxu0 %v1021
        %1087 = vmatprep.subr.bf16.mxu0 %v1024
        %1088 = vmatpush1.bf16.msra.mxu0 %v1023
        %1089 = vmatprep.mubr.bf16.mxu0 %v841
        %1090 = vmatmul.mubr.bf16.gmra.mrb[0].mxu0 %v840
        %v1091 = vpop.f32.mrb[0].mxu0
        %v1092 = vadd.f32 %v892, %v1091
        %v1093 = vpop.f32.mrb[0].mxu0
        %v1094 = vadd.f32 %v896, %v1093
        %v1095 = vpop.f32.mrb[0].mxu0
        %v1096 = vadd.f32 %v892, %v1095
        %v1097 = vpop.f32.mrb[0].mxu0
        %v1098 = vadd.f32 %v896, %v1097
        %1099 = vmatprep.mubr.bf16.mxu0 %v843
        %1100 = vmatmul.mubr.bf16.gmra.mrb[0].mxu0 %v842
        %v1101 = vpop.f32.mrb[0].mxu0
        %v1102 = vadd.f32 %v892, %v1101
        %v1103 = vpop.f32.mrb[0].mxu0
        %v1104 = vadd.f32 %v896, %v1103
        %v1105 = vpop.f32.mrb[0].mxu0
        %v1106 = vadd.f32 %v892, %v1105
        %v1107 = vpop.f32.mrb[0].mxu0
        %v1108 = vadd.f32 %v896, %v1107
        %1109 = vdwg.mxu0
        %v1110 = vpack.c.bf16 %v1096, %v1092
        %v1111 = vpack.c.bf16 %v1098, %v1094
        %v1112 = vpack.c.bf16 %v1106, %v1102
        %v1113 = vpack.c.bf16 %v1108, %v1104
        %v1114 = vmax.bf16 %v1110, 0
        %v1115 = vmax.bf16 %v1111, 0
        %v1116 = vmax.bf16 %v1112, 0
        %v1117 = vmax.bf16 %v1113, 0
        %v1118 = vld [vmem:[#allocation6] sm:$0xff]
        %v1119 = vld [vmem:[#allocation6 + $0x8] sm:$0xff]
        %v1120 = vld [vmem:[#allocation6 + $0x10] sm:$0xff]
        %v1121 = vld [vmem:[#allocation6 + $0x18] sm:$0xff]
        %v1122 = vld [vmem:[#allocation6 + $0x20] sm:$0xff]
        %v1123 = vld [vmem:[#allocation6 + $0x28] sm:$0xff]
        %v1124 = vld [vmem:[#allocation6 + $0x30] sm:$0xff]
        %v1125 = vld [vmem:[#allocation6 + $0x38] sm:$0xff]
        %v1126 = vld [vmem:[#allocation6 + $0x40] sm:$0xff]
        %v1127 = vld [vmem:[#allocation6 + $0x48] sm:$0xff]
        %v1128 = vld [vmem:[#allocation6 + $0x50] sm:$0xff]
        %v1129 = vld [vmem:[#allocation6 + $0x58] sm:$0xff]
        %v1130 = vld [vmem:[#allocation6 + $0x60] sm:$0xff]
        %v1131 = vld [vmem:[#allocation6 + $0x68] sm:$0xff]
        %v1132 = vld [vmem:[#allocation6 + $0x70] sm:$0xff]
        %v1133 = vld [vmem:[#allocation6 + $0x78] sm:$0xff]
        %v1134 = vld [vmem:[#allocation6 + $0x80] sm:$0xff]
        %v1135 = vld [vmem:[#allocation6 + $0x88] sm:$0xff]
        %v1136 = vld [vmem:[#allocation6 + $0x90] sm:$0xff]
        %v1137 = vld [vmem:[#allocation6 + $0x98] sm:$0xff]
        %v1138 = vld [vmem:[#allocation6 + $0xa0] sm:$0xff]
        %v1139 = vld [vmem:[#allocation6 + $0xa8] sm:$0xff]
        %v1140 = vld [vmem:[#allocation6 + $0xb0] sm:$0xff]
        %v1141 = vld [vmem:[#allocation6 + $0xb8] sm:$0xff]
        %v1142 = vld [vmem:[#allocation6 + $0xc0] sm:$0xff]
        %v1143 = vld [vmem:[#allocation6 + $0xc8] sm:$0xff]
        %v1144 = vld [vmem:[#allocation6 + $0xd0] sm:$0xff]
        %v1145 = vld [vmem:[#allocation6 + $0xd8] sm:$0xff]
        %v1146 = vld [vmem:[#allocation6 + $0xe0] sm:$0xff]
        %v1147 = vld [vmem:[#allocation6 + $0xe8] sm:$0xff]
        %v1148 = vld [vmem:[#allocation6 + $0xf0] sm:$0xff]
        %v1149 = vld [vmem:[#allocation6 + $0xf8] sm:$0xff]
        %v1150 = vld [vmem:[%s8] sm:$0x3]
        %v1151 = vunpack.c.l.bf16 %v1150
        %v1153 = vlaneseq
        %v1154 = vshrl.u32 %v1153, 7
        %v1155 = vsub.s32 0, %v1154
        %v1156 = vrot.slane %v1151, %v1155
        %v1157 = vlaneseq
        %v1158 = vshrl.u32 %v1157, 7
        %v1159 = vsub.s32 2, %v1158
        %v1160 = vrot.slane %v1151, %v1159
        %v1163 = vlaneseq
        %v1164 = vshrl.u32 %v1163, 7
        %v1165 = vsub.s32 0, %v1164
        %v1166 = vrot.slane %v1156, %v1165
        %v1167 = vlaneseq
        %v1168 = vshrl.u32 %v1167, 7
        %v1169 = vsub.s32 0, %v1168
        %v1170 = vrot.slane %v1160, %v1169
        %v1203 = vunpack.c.l.b16 %v1118
        %v1204 = vunpack.c.h.b16 %v1118
        %v1205 = vunpack.c.l.b16 %v1119
        %v1206 = vunpack.c.h.b16 %v1119
        %v1207 = vunpack.c.l.b16 %v1120
        %v1208 = vunpack.c.h.b16 %v1120
        %v1209 = vunpack.c.l.b16 %v1121
        %v1210 = vunpack.c.h.b16 %v1121
        %v1211 = vunpack.c.l.b16 %v1122
        %v1212 = vunpack.c.h.b16 %v1122
        %v1213 = vunpack.c.l.b16 %v1123
        %v1214 = vunpack.c.h.b16 %v1123
        %v1215 = vunpack.c.l.b16 %v1124
        %v1216 = vunpack.c.h.b16 %v1124
        %v1217 = vunpack.c.l.b16 %v1125
        %v1218 = vunpack.c.h.b16 %v1125
        %v1219 = vunpack.c.l.b16 %v1126
        %v1220 = vunpack.c.h.b16 %v1126
        %v1221 = vunpack.c.l.b16 %v1127
        %v1222 = vunpack.c.h.b16 %v1127
        %v1223 = vunpack.c.l.b16 %v1128
        %v1224 = vunpack.c.h.b16 %v1128
        %v1225 = vunpack.c.l.b16 %v1129
        %v1226 = vunpack.c.h.b16 %v1129
        %v1227 = vunpack.c.l.b16 %v1130
        %v1228 = vunpack.c.h.b16 %v1130
        %v1229 = vunpack.c.l.b16 %v1131
        %v1230 = vunpack.c.h.b16 %v1131
        %v1231 = vunpack.c.l.b16 %v1132
        %v1232 = vunpack.c.h.b16 %v1132
        %v1233 = vunpack.c.l.b16 %v1133
        %v1234 = vunpack.c.h.b16 %v1133
        %v1235 = vunpack.c.l.b16 %v1134
        %v1236 = vunpack.c.h.b16 %v1134
        %v1237 = vunpack.c.l.b16 %v1135
        %v1238 = vunpack.c.h.b16 %v1135
        %v1239 = vunpack.c.l.b16 %v1136
        %v1240 = vunpack.c.h.b16 %v1136
        %v1241 = vunpack.c.l.b16 %v1137
        %v1242 = vunpack.c.h.b16 %v1137
        %v1243 = vunpack.c.l.b16 %v1138
        %v1244 = vunpack.c.h.b16 %v1138
        %v1245 = vunpack.c.l.b16 %v1139
        %v1246 = vunpack.c.h.b16 %v1139
        %v1247 = vunpack.c.l.b16 %v1140
        %v1248 = vunpack.c.h.b16 %v1140
        %v1249 = vunpack.c.l.b16 %v1141
        %v1250 = vunpack.c.h.b16 %v1141
        %v1251 = vunpack.c.l.b16 %v1142
        %v1252 = vunpack.c.h.b16 %v1142
        %v1253 = vunpack.c.l.b16 %v1143
        %v1254 = vunpack.c.h.b16 %v1143
        %v1255 = vunpack.c.l.b16 %v1144
        %v1256 = vunpack.c.h.b16 %v1144
        %v1257 = vunpack.c.l.b16 %v1145
        %v1258 = vunpack.c.h.b16 %v1145
        %v1259 = vunpack.c.l.b16 %v1146
        %v1260 = vunpack.c.h.b16 %v1146
        %v1261 = vunpack.c.l.b16 %v1147
        %v1262 = vunpack.c.h.b16 %v1147
        %v1263 = vunpack.c.l.b16 %v1148
        %v1264 = vunpack.c.h.b16 %v1148
        %v1265 = vunpack.c.l.b16 %v1149
        %v1266 = vunpack.c.h.b16 %v1149
        %v1267 = vpack.c.b16 %v1205, %v1203
        %v1268 = vpack.c.b16 %v1206, %v1204
        %v1269 = vpack.c.b16 %v1209, %v1207
        %v1270 = vpack.c.b16 %v1210, %v1208
        %v1271 = vpack.c.b16 %v1213, %v1211
        %v1272 = vpack.c.b16 %v1214, %v1212
        %v1273 = vpack.c.b16 %v1217, %v1215
        %v1274 = vpack.c.b16 %v1218, %v1216
        %v1275 = vpack.c.b16 %v1221, %v1219
        %v1276 = vpack.c.b16 %v1222, %v1220
        %v1277 = vpack.c.b16 %v1225, %v1223
        %v1278 = vpack.c.b16 %v1226, %v1224
        %v1279 = vpack.c.b16 %v1229, %v1227
        %v1280 = vpack.c.b16 %v1230, %v1228
        %v1281 = vpack.c.b16 %v1233, %v1231
        %v1282 = vpack.c.b16 %v1234, %v1232
        %v1283 = vpack.c.b16 %v1237, %v1235
        %v1284 = vpack.c.b16 %v1238, %v1236
        %v1285 = vpack.c.b16 %v1241, %v1239
        %v1286 = vpack.c.b16 %v1242, %v1240
        %v1287 = vpack.c.b16 %v1245, %v1243
        %v1288 = vpack.c.b16 %v1246, %v1244
        %v1289 = vpack.c.b16 %v1249, %v1247
        %v1290 = vpack.c.b16 %v1250, %v1248
        %v1291 = vpack.c.b16 %v1253, %v1251
        %v1292 = vpack.c.b16 %v1254, %v1252
        %v1293 = vpack.c.b16 %v1257, %v1255
        %v1294 = vpack.c.b16 %v1258, %v1256
        %v1295 = vpack.c.b16 %v1261, %v1259
        %v1296 = vpack.c.b16 %v1262, %v1260
        %v1297 = vpack.c.b16 %v1265, %v1263
        %v1298 = vpack.c.b16 %v1266, %v1264
        %1331 = vmatprep.subr.bf16.mxu0 %v1268
        %1332 = vmatpush1.bf16.msra.mxu0 %v1267
        %1333 = vmatprep.subr.bf16.mxu0 %v1270
        %1334 = vmatpush1.bf16.msra.mxu0 %v1269
        %1335 = vmatprep.subr.bf16.mxu0 %v1272
        %1336 = vmatpush1.bf16.msra.mxu0 %v1271
        %1337 = vmatprep.subr.bf16.mxu0 %v1274
        %1338 = vmatpush1.bf16.msra.mxu0 %v1273
        %1339 = vmatprep.subr.bf16.mxu0 %v1276
        %1340 = vmatpush1.bf16.msra.mxu0 %v1275
        %1341 = vmatprep.subr.bf16.mxu0 %v1278
        %1342 = vmatpush1.bf16.msra.mxu0 %v1277
        %1343 = vmatprep.subr.bf16.mxu0 %v1280
        %1344 = vmatpush1.bf16.msra.mxu0 %v1279
        %1345 = vmatprep.subr.bf16.mxu0 %v1282
        %1346 = vmatpush1.bf16.msra.mxu0 %v1281
        %1347 = vmatprep.subr.bf16.mxu0 %v1284
        %1348 = vmatpush1.bf16.msra.mxu0 %v1283
        %1349 = vmatprep.subr.bf16.mxu0 %v1286
        %1350 = vmatpush1.bf16.msra.mxu0 %v1285
        %1351 = vmatprep.subr.bf16.mxu0 %v1288
        %1352 = vmatpush1.bf16.msra.mxu0 %v1287
        %1353 = vmatprep.subr.bf16.mxu0 %v1290
        %1354 = vmatpush1.bf16.msra.mxu0 %v1289
        %1355 = vmatprep.subr.bf16.mxu0 %v1292
        %1356 = vmatpush1.bf16.msra.mxu0 %v1291
        %1357 = vmatprep.subr.bf16.mxu0 %v1294
        %1358 = vmatpush1.bf16.msra.mxu0 %v1293
        %1359 = vmatprep.subr.bf16.mxu0 %v1296
        %1360 = vmatpush1.bf16.msra.mxu0 %v1295
        %1361 = vmatprep.subr.bf16.mxu0 %v1298
        %1362 = vmatpush1.bf16.msra.mxu0 %v1297
        %1363 = vmatprep.mubr.bf16.mxu0 %v1115
        %1364 = vmatmul.mubr.bf16.gmra.mrb[0].mxu0 %v1114
        %v1365 = vpop.f32.mrb[0].mxu0
        %v1366 = vadd.f32 %v1166, %v1365
        %v1367 = vpop.f32.mrb[0].mxu0
        %v1368 = vadd.f32 %v1170, %v1367
        %v1369 = vpop.f32.mrb[0].mxu0
        %v1370 = vadd.f32 %v1166, %v1369
        %v1371 = vpop.f32.mrb[0].mxu0
        %v1372 = vadd.f32 %v1170, %v1371
        %1373 = vmatprep.mubr.bf16.mxu0 %v1117
        %1374 = vmatmul.mubr.bf16.gmra.mrb[0].mxu0 %v1116
        %v1375 = vpop.f32.mrb[0].mxu0
        %v1376 = vadd.f32 %v1166, %v1375
        %v1377 = vpop.f32.mrb[0].mxu0
        %v1378 = vadd.f32 %v1170, %v1377
        %v1379 = vpop.f32.mrb[0].mxu0
        %v1380 = vadd.f32 %v1166, %v1379
        %v1381 = vpop.f32.mrb[0].mxu0
        %v1382 = vadd.f32 %v1170, %v1381
        %1383 = vdwg.mxu0
        %v1384 = vpack.c.bf16 %v1370, %v1366
        %v1385 = vpack.c.bf16 %v1372, %v1368
        %v1386 = vpack.c.bf16 %v1380, %v1376
        %v1387 = vpack.c.bf16 %v1382, %v1378
        %v1388 = vmax.bf16 %v1384, 0
        %v1389 = vmax.bf16 %v1385, 0
        %v1390 = vmax.bf16 %v1386, 0
        %v1391 = vmax.bf16 %v1387, 0
        %v1392 = vld [vmem:[#allocation7] sm:$0xf]
        %v1393 = vld [vmem:[#allocation7 + $0x4] sm:$0xf]
        %v1394 = vld [vmem:[#allocation7 + $0x8] sm:$0xf]
        %v1395 = vld [vmem:[#allocation7 + $0xc] sm:$0xf]
        %v1396 = vld [vmem:[#allocation7 + $0x10] sm:$0xf]
        %v1397 = vld [vmem:[#allocation7 + $0x14] sm:$0xf]
        %v1398 = vld [vmem:[#allocation7 + $0x18] sm:$0xf]
        %v1399 = vld [vmem:[#allocation7 + $0x1c] sm:$0xf]
        %v1400 = vld [vmem:[#allocation7 + $0x20] sm:$0xf]
        %v1401 = vld [vmem:[#allocation7 + $0x24] sm:$0xf]
        %v1402 = vld [vmem:[#allocation7 + $0x28] sm:$0xf]
        %v1403 = vld [vmem:[#allocation7 + $0x2c] sm:$0xf]
        %v1404 = vld [vmem:[#allocation7 + $0x30] sm:$0xf]
        %v1405 = vld [vmem:[#allocation7 + $0x34] sm:$0xf]
        %v1406 = vld [vmem:[#allocation7 + $0x38] sm:$0xf]
        %v1407 = vld [vmem:[#allocation7 + $0x3c] sm:$0xf]
        %v1408 = vld [vmem:[#allocation7 + $0x40] sm:$0xf]
        %v1409 = vld [vmem:[#allocation7 + $0x44] sm:$0xf]
        %v1410 = vld [vmem:[#allocation7 + $0x48] sm:$0xf]
        %v1411 = vld [vmem:[#allocation7 + $0x4c] sm:$0xf]
        %v1412 = vld [vmem:[#allocation7 + $0x50] sm:$0xf]
        %v1413 = vld [vmem:[#allocation7 + $0x54] sm:$0xf]
        %v1414 = vld [vmem:[#allocation7 + $0x58] sm:$0xf]
        %v1415 = vld [vmem:[#allocation7 + $0x5c] sm:$0xf]
        %v1416 = vld [vmem:[#allocation7 + $0x60] sm:$0xf]
        %v1417 = vld [vmem:[#allocation7 + $0x64] sm:$0xf]
        %v1418 = vld [vmem:[#allocation7 + $0x68] sm:$0xf]
        %v1419 = vld [vmem:[#allocation7 + $0x6c] sm:$0xf]
        %v1420 = vld [vmem:[#allocation7 + $0x70] sm:$0xf]
        %v1421 = vld [vmem:[#allocation7 + $0x74] sm:$0xf]
        %v1422 = vld [vmem:[#allocation7 + $0x78] sm:$0xf]
        %v1423 = vld [vmem:[#allocation7 + $0x7c] sm:$0xf]
        %v1424 = vld [vmem:[%s10] sm:$0x1]
        %v1425 = vunpack.c.l.bf16 %v1424
        %v1426 = vlaneseq
        %v1427 = vshrl.u32 %v1426, 7
        %v1428 = vsub.s32 0, %v1427
        %v1429 = vrot.slane %v1425, %v1428
        %v1462 = vunpack.c.l.b16 %v1392
        %v1463 = vunpack.c.l.b16 %v1393
        %v1464 = vunpack.c.l.b16 %v1394
        %v1465 = vunpack.c.l.b16 %v1395
        %v1466 = vunpack.c.l.b16 %v1396
        %v1467 = vunpack.c.l.b16 %v1397
        %v1468 = vunpack.c.l.b16 %v1398
        %v1469 = vunpack.c.l.b16 %v1399
        %v1470 = vunpack.c.l.b16 %v1400
        %v1471 = vunpack.c.l.b16 %v1401
        %v1472 = vunpack.c.l.b16 %v1402
        %v1473 = vunpack.c.l.b16 %v1403
        %v1474 = vunpack.c.l.b16 %v1404
        %v1475 = vunpack.c.l.b16 %v1405
        %v1476 = vunpack.c.l.b16 %v1406
        %v1477 = vunpack.c.l.b16 %v1407
        %v1478 = vunpack.c.l.b16 %v1408
        %v1479 = vunpack.c.l.b16 %v1409
        %v1480 = vunpack.c.l.b16 %v1410
        %v1481 = vunpack.c.l.b16 %v1411
        %v1482 = vunpack.c.l.b16 %v1412
        %v1483 = vunpack.c.l.b16 %v1413
        %v1484 = vunpack.c.l.b16 %v1414
        %v1485 = vunpack.c.l.b16 %v1415
        %v1486 = vunpack.c.l.b16 %v1416
        %v1487 = vunpack.c.l.b16 %v1417
        %v1488 = vunpack.c.l.b16 %v1418
        %v1489 = vunpack.c.l.b16 %v1419
        %v1490 = vunpack.c.l.b16 %v1420
        %v1491 = vunpack.c.l.b16 %v1421
        %v1492 = vunpack.c.l.b16 %v1422
        %v1493 = vunpack.c.l.b16 %v1423
        %v1494 = vpack.c.b16 %v1463, %v1462
        %v1495 = vpack.c.b16 %v1465, %v1464
        %v1496 = vpack.c.b16 %v1467, %v1466
        %v1497 = vpack.c.b16 %v1469, %v1468
        %v1498 = vpack.c.b16 %v1471, %v1470
        %v1499 = vpack.c.b16 %v1473, %v1472
        %v1500 = vpack.c.b16 %v1475, %v1474
        %v1501 = vpack.c.b16 %v1477, %v1476
        %v1502 = vpack.c.b16 %v1479, %v1478
        %v1503 = vpack.c.b16 %v1481, %v1480
        %v1504 = vpack.c.b16 %v1483, %v1482
        %v1505 = vpack.c.b16 %v1485, %v1484
        %v1506 = vpack.c.b16 %v1487, %v1486
        %v1507 = vpack.c.b16 %v1489, %v1488
        %v1508 = vpack.c.b16 %v1491, %v1490
        %v1509 = vpack.c.b16 %v1493, %v1492
        %1526 = vmatprep.subr.bf16.mxu0 0
        %1527 = vmatpush1.bf16.msra.mxu0 %v1494
        %1528 = vmatprep.subr.bf16.mxu0 0
        %1529 = vmatpush1.bf16.msra.mxu0 %v1495
        %1530 = vmatprep.subr.bf16.mxu0 0
        %1531 = vmatpush1.bf16.msra.mxu0 %v1496
        %1532 = vmatprep.subr.bf16.mxu0 0
        %1533 = vmatpush1.bf16.msra.mxu0 %v1497
        %1534 = vmatprep.subr.bf16.mxu0 0
        %1535 = vmatpush1.bf16.msra.mxu0 %v1498
        %1536 = vmatprep.subr.bf16.mxu0 0
        %1537 = vmatpush1.bf16.msra.mxu0 %v1499
        %1538 = vmatprep.subr.bf16.mxu0 0
        %1539 = vmatpush1.bf16.msra.mxu0 %v1500
        %1540 = vmatprep.subr.bf16.mxu0 0
        %1541 = vmatpush1.bf16.msra.mxu0 %v1501
        %1542 = vmatprep.subr.bf16.mxu0 0
        %1543 = vmatpush1.bf16.msra.mxu0 %v1502
        %1544 = vmatprep.subr.bf16.mxu0 0
        %1545 = vmatpush1.bf16.msra.mxu0 %v1503
        %1546 = vmatprep.subr.bf16.mxu0 0
        %1547 = vmatpush1.bf16.msra.mxu0 %v1504
        %1548 = vmatprep.subr.bf16.mxu0 0
        %1549 = vmatpush1.bf16.msra.mxu0 %v1505
        %1550 = vmatprep.subr.bf16.mxu0 0
        %1551 = vmatpush1.bf16.msra.mxu0 %v1506
        %1552 = vmatprep.subr.bf16.mxu0 0
        %1553 = vmatpush1.bf16.msra.mxu0 %v1507
        %1554 = vmatprep.subr.bf16.mxu0 0
        %1555 = vmatpush1.bf16.msra.mxu0 %v1508
        %1556 = vmatprep.subr.bf16.mxu0 0
        %1557 = vmatpush1.bf16.msra.mxu0 %v1509
        %1558 = vmatprep.mubr.bf16.mxu0 %v1389
        %1559 = vmatmul.mubr.bf16.gmra.mrb[0].mxu0 %v1388
        %v1560 = vpop.f32.mrb[0].mxu0
        %v1561 = vadd.f32 %v1429, %v1560
        %v1562 = vpop.f32.mrb[0].mxu0
        %v1563 = vpop.f32.mrb[0].mxu0
        %v1564 = vadd.f32 %v1429, %v1563
        %v1565 = vpop.f32.mrb[0].mxu0
        %1566 = vmatprep.mubr.bf16.mxu0 %v1391
        %1567 = vmatmul.mubr.bf16.gmra.mrb[0].mxu0 %v1390
        %v1568 = vpop.f32.mrb[0].mxu0
        %v1569 = vadd.f32 %v1429, %v1568
        %v1570 = vpop.f32.mrb[0].mxu0
        %v1571 = vpop.f32.mrb[0].mxu0
        %v1572 = vadd.f32 %v1429, %v1571
        %v1573 = vpop.f32.mrb[0].mxu0
        %1574 = vdwg.mxu0
        %v1575 = vpack.c.bf16 %v1564, %v1561
        %v1576 = vpack.c.bf16 %v1572, %v1569
        %v1579 = vunpack.c.l.b16 %v1575
        %v1580 = vunpack.c.h.b16 %v1575
        %v1581 = vunpack.c.l.b16 %v1576
        %v1582 = vunpack.c.h.b16 %v1576
        %v1583 = vpack.c.b16 %v1579, %v1579
        %v1584 = vpack.c.b16 %v1580, %v1580
        %v1585 = vpack.c.b16 %v1581, %v1581
        %v1586 = vpack.c.b16 %v1582, %v1582
        %1591 = vst [vmem:[%s447] sm:$0xf] %v1583
        %1592 = vst [vmem:[%s447 + $0x4] sm:$0xf] %v1584
        %1593 = vst [vmem:[%s447 + $0x8] sm:$0xf] %v1585
        %1594 = vst [vmem:[%s447 + $0xc] sm:$0xf] %v1586
        %s1595 = smul.u32 4, %s25
        %p1596 = scmp.lt.s32.totalorder %s1595, 15
        %s1597 = scalar_select %p1596, %s1595, 15
        %s1598 = smul.addr %s1597, 4
        %s1599 = scalar_lea.vmem %s11, %s1598
        // Predicated region
        $region81: #{dqn_forward.1} parent=63 // pred_check
          %p1600 = pneg %p279
        $region82: #{dqn_forward.1} parent=63 // pred_check_branch
          %1602 = sbr.rel (%p1600) target = $region84
        $region83: #{dqn_forward.1} parent=63 // pred_region
          %s1603 = smul.u32 4, %s25
        $region84: #{dqn_forward.1} parent=63 // pred_fallthru
          _
      $region64: #{dqn_forward.1} parent=5 // pred_fallthru
        _
      %p1604 = scmp.le.s32.totalorder 2, %s20
      // Predicated region
      $region85: #{dqn_forward.1} parent=5 // pred_check
        %p1605 = pneg %p1604
      $region86: #{dqn_forward.1} parent=5 // pred_check_branch
        %1607 = sbr.rel (%p1605) target = $region88
      $region87: #{dqn_forward.1} parent=5 // pred_region
        %s1608 = ssub.s32 %s20, 2
        // Predicated region
        $region89: #{dqn_forward.1} parent=87 // pred_check
          %p1609 = pneg %p285
        $region90: #{dqn_forward.1} parent=87 // pred_check_branch
          %1611 = sbr.rel (%p1609) target = $region92
        $region91: #{dqn_forward.1} parent=87 // pred_region
          %s1612 = smul.u32 4, %s26
          %p1613 = scmp.lt.s32.totalorder %s1612, 15
          %s1614 = scalar_select %p1613, %s1612, 15
          %s1615 = smul.addr %s1614, 4
          %s1616 = scalar_lea.vmem %s11, %s1615
        $region92: #{dqn_forward.1} parent=87 // pred_fallthru
          _
      $region88: #{dqn_forward.1} parent=5 // pred_fallthru
        _
    $region6: #{dqn_forward.1} parent=1 // loop_footer
      %s24 = sadd.s32 1, %s20
    $region7: #{dqn_forward.1} parent=1 // loop_footer_branch
      %19 = sbr.rel target = $region3
    $region8: #{dqn_forward.1} parent=1 // loop_exit
      _
    %1617 = vsyncpa [#allocation3], 1
    %s1618 = scalar_lea.sflag [#allocation3], 1
    %1619 = vsyncpa %s1618, 1
    %1620 = vsyncpa [#allocation5], 1
    %1621 = vsyncpa [#allocation8], 1

</llo_original>
